<compile_context>
chip_gen: v7x
topology: tpu7x:2x2x1
jax: 0.10.0
libtpu: 0.0.40
codegen_flags: <defaults>
</compile_context>

<pallas_src>
import functools
import numpy as np
import jax
import jax.numpy as jnp
from jax.experimental import pallas as pl
from jax.experimental.pallas import tpu as pltpu


def _round_up(x, m):
    return (x + m - 1) // m * m


def _lstm_chunk_kernel(gx_ref, whh_ref, out_ref, h_scr, c_scr, *,
                       seq_len, t_chunk):
    """One (t_chunk, Bblk, 4H) slab of pre-projected gates.

    gx_ref : (t_chunk, Bblk, 4H) f32  = x @ W_ih + (b_ih + b_hh), time-major
    whh_ref: (H, 4H)             bf16 recurrent weights (resident)
    out_ref: (Bblk, H)           f32  last-timestep hidden state
    h_scr / c_scr: (Bblk, H)     f32  recurrent state, persists across time blocks
    """
    tb = pl.program_id(1)

    @pl.when(tb == 0)
    def _():
        h_scr[...] = jnp.zeros_like(h_scr)
        c_scr[...] = jnp.zeros_like(c_scr)

    H = h_scr.shape[-1]
    w_hh = whh_ref[...]                      # hoisted out of the time loop
    needs_mask = (seq_len % t_chunk) != 0    # static
    t0 = tb * t_chunk

    def step(i, carry):
        h, c = carry
        # Only recurrent matmul on the critical path: bf16 in, f32 accumulate.
        gates = gx_ref[i] + jnp.dot(h.astype(w_hh.dtype), w_hh,
                                    preferred_element_type=jnp.float32)
        i_g = jax.nn.sigmoid(gates[:, 0 * H:1 * H])
        f_g = jax.nn.sigmoid(gates[:, 1 * H:2 * H])
        g_g = jnp.tanh(gates[:, 2 * H:3 * H])
        o_g = jax.nn.sigmoid(gates[:, 3 * H:4 * H])
        c_new = f_g * c + i_g * g_g
        h_new = o_g * jnp.tanh(c_new)
        if needs_mask:  # only traced when T is not a multiple of t_chunk
            valid = (t0 + i) < seq_len
            h_new = jnp.where(valid, h_new, h)
            c_new = jnp.where(valid, c_new, c)
        return h_new, c_new

    h, c = jax.lax.fori_loop(0, t_chunk, step, (h_scr[...], c_scr[...]),
                             unroll=True)
    h_scr[...] = h
    c_scr[...] = c

    @pl.when(tb == pl.num_programs(1) - 1)
    def _():
        out_ref[...] = h.astype(out_ref.dtype)


def lstm_last_pallas(gates_x, w_hh_bf16, *, block_b, t_chunk=32):
    """gates_x: (T, Bp, 4H) f32 pre-projected inputs (x@W_ih + bias), time-major.
    w_hh_bf16: (H, 4H) bf16 recurrent weights.
    Returns (Bp, H) f32 = hidden state after the final timestep."""
    T, Bp, G = gates_x.shape
    H = w_hh_bf16.shape[0]
    assert G == 4 * H
    assert Bp % block_b == 0 and block_b % 8 == 0

    tc = min(t_chunk, T)
    Tp = _round_up(T, tc)
    if Tp != T:
        # Pad the time axis (padded steps are masked off inside the kernel).
        gates_x = jnp.pad(gates_x, ((0, Tp - T), (0, 0), (0, 0)))
    nt = Tp // tc
    nb = Bp // block_b

    kernel = functools.partial(_lstm_chunk_kernel, seq_len=T, t_chunk=tc)
    return pl.pallas_call(
        kernel,
        out_shape=jax.ShapeDtypeStruct((Bp, H), jnp.float32),
        grid=(nb, nt),
        in_specs=[
            # Tc timesteps of pre-projected gates per block (strided block DMA).
            pl.BlockSpec((tc, block_b, 4 * H), lambda b, t: (t, b, 0)),
            # Recurrent weights, resident across the whole grid.
            pl.BlockSpec((H, 4 * H), lambda b, t: (0, 0)),
        ],
        out_specs=pl.BlockSpec((block_b, H), lambda b, t: (b, 0)),
        scratch_shapes=[
            pltpu.VMEM((block_b, H), jnp.float32),   # h state
            pltpu.VMEM((block_b, H), jnp.float32),   # c state
        ],
        compiler_params=pltpu.CompilerParams(
            dimension_semantics=("parallel", "arbitrary")),
    )(gates_x, w_hh_bf16)


class SMILESEncoderPallas:
    """Deterministically initialized equivalent of the PyTorch SMILESEncoder."""

    def __init__(self, vocab_size, max_len, padding_idx,
                 embedding_dim=64, dim=128, num_layers=1, bidirectional=False):
        assert num_layers == 1 and not bidirectional  # module defaults
        self.vocab_size = vocab_size
        self.max_len = max_len
        self.padding_idx = padding_idx
        self.embedding_dim = embedding_dim
        self.dim = dim

        key = jax.random.PRNGKey(0)
        k_emb, k_wih, k_whh, k_bih, k_bhh = jax.random.split(key, 5)

        # nn.Embedding: N(0,1) init, padding_idx row zeroed.
        emb = jax.random.normal(k_emb, (vocab_size, embedding_dim), jnp.float32)
        self.embedding = emb.at[padding_idx].set(0.0)

        # nn.LSTM: uniform(-1/sqrt(H), 1/sqrt(H)) init, gate order [i, f, g, o].
        H, E = dim, embedding_dim
        s = 1.0 / np.sqrt(H)
        self.w_ih = jax.random.uniform(k_wih, (E, 4 * H), jnp.float32, -s, s)
        self.w_hh = jax.random.uniform(k_whh, (H, 4 * H), jnp.float32, -s, s)
        b_ih = jax.random.uniform(k_bih, (4 * H,), jnp.float32, -s, s)
        b_hh = jax.random.uniform(k_bhh, (4 * H,), jnp.float32, -s, s)
        self.bias = (b_ih + b_hh).reshape(1, 4 * H)

        # Hoisted input projection: one exact-f32 matmul at init time turns the
        # per-token x @ W_ih + bias into a pure table gather.
        self.emb_proj = (
            jnp.dot(self.embedding, self.w_ih,
                    precision=jax.lax.Precision.HIGHEST)
            + self.bias)                                      # (vocab, 4H)
        # Recurrent weights in bf16 (native MXU fast path, f32 accumulation).
        self.w_hh_bf16 = self.w_hh.astype(jnp.bfloat16)

    def __call__(self, smi):
        # forward: x = data.smi.view(-1, max_len); feat, _ = LSTM(Emb(x)); feat[:, -1]
        x = smi.reshape(-1, self.max_len)                     # (B, T) int32
        B, T = x.shape

        # Pad batch to a sublane multiple; tile at 128 rows when B is large so
        # the "parallel" batch axis can shard across v7x TensorCores.
        if B <= 128:
            block_b = _round_up(B, 8)
            Bp = block_b
        else:
            block_b = 128
            Bp = _round_up(B, 128)
        if Bp != B:
            x = jnp.pad(x, ((0, Bp - B), (0, 0)),
                        constant_values=self.padding_idx)

        # Time-major gather of the pre-projected table: (T, Bp, 4H).  Only the
        # tiny int32 token matrix is transposed, never the float tensor.
        gates_x = self.emb_proj[x.T]

        h_last = lstm_last_pallas(gates_x, self.w_hh_bf16, block_b=block_b)
        return h_last[:B]                                     # (B, H)


def _reference_lstm_last(tokens, embedding, w_ih, w_hh_bf16, bias):
    """Pure-JAX reference of the same math (exact-f32 input projection,
    bf16-in / f32-acc recurrent matmul) for verification."""
    x_emb = embedding[tokens]                                 # (B, T, E)
    gx = jnp.dot(x_emb, w_ih,
                 precision=jax.lax.Precision.HIGHEST) + bias  # (B, T, 4H)
    B, T, _ = gx.shape
    H = w_hh_bf16.shape[0]

    def step(carry, g_t):
        h, c = carry
        gates = g_t + jnp.dot(h.astype(jnp.bfloat16), w_hh_bf16,
                              preferred_element_type=jnp.float32)
        i = jax.nn.sigmoid(gates[:, 0 * H:1 * H])
        f = jax.nn.sigmoid(gates[:, 1 * H:2 * H])
        g = jnp.tanh(gates[:, 2 * H:3 * H])
        o = jax.nn.sigmoid(gates[:, 3 * H:4 * H])
        c = f * c + i * g
        h = o * jnp.tanh(c)
        return (h, c), None

    h0 = jnp.zeros((B, H), jnp.float32)
    c0 = jnp.zeros((B, H), jnp.float32)
    (h, _), _ = jax.lax.scan(step, (h0, c0), jnp.transpose(gx, (1, 0, 2)))
    return h


if __name__ == "__main__":
    # Small shapes consistent with the module defaults (embedding_dim=64, dim=128).
    VOCAB, MAX_LEN, PAD = 32, 8, 0
    EMB, HID = 64, 128
    BATCH = 4

    enc = SMILESEncoderPallas(VOCAB, MAX_LEN, PAD, embedding_dim=EMB, dim=HID)

    key = jax.random.PRNGKey(0)
    smi = jax.random.randint(key, (BATCH, MAX_LEN), 0, VOCAB, dtype=jnp.int32)
    smi = smi.at[:, -2:].set(PAD)    # realistic trailing padding tokens

    out = jax.block_until_ready(enc(smi))
    assert out.shape == (BATCH, HID)

    ref = jax.block_until_ready(
        _reference_lstm_last(smi, enc.embedding, enc.w_ih,
                             enc.w_hh_bf16, enc.bias))
    np.testing.assert_allclose(np.asarray(out), np.asarray(ref),
                               atol=2e-3, rtol=2e-3)

    print("KERNEL_OK")
</pallas_src>

<mosaic_0001>
module attributes {stable_mosaic.version = 11 : i64} {
  func.func @_lstm_chunk_kernel(%arg0: i32, %arg1: i32, %arg2: memref<8x8x512xf32, #tpu.memory_space<vmem>>, %arg3: memref<128x512xbf16, #tpu.memory_space<vmem>>, %arg4: memref<8x128xf32, #tpu.memory_space<vmem>>, %arg5: memref<8x128xf32, #tpu.memory_space<vmem>>, %arg6: memref<8x128xf32, #tpu.memory_space<vmem>>) attributes {dimension_semantics = [#tpu.dimension_semantics<parallel>, #tpu.dimension_semantics<arbitrary>], iteration_bounds = array<i64: 1, 1>, scalar_prefetch = 0 : i64, scratch_operands = 2 : i64, tpu.core_type = #tpu.core_type<tc>, window_params = [{transform_indices = @transform_0, window_bounds = array<i64: 8, 8, 512>}, {pipeline_mode = #tpu.pipeline_mode<synchronous>, transform_indices = @transform_1, window_bounds = array<i64: 128, 512>}, {transform_indices = @transform_2, window_bounds = array<i64: 8, 128>}]} {
    %c0_i32 = arith.constant 0 : i32
    %0 = arith.cmpi eq, %arg1, %c0_i32 : i32
    %1 = arith.extui %0 : i1 to i32
    %c0_i32_0 = arith.constant 0 : i32
    %2 = arith.cmpi ne, %1, %c0_i32_0 : i32
    scf.if %2 {
      %cst_60 = arith.constant 0.000000e+00 : f32
      %259 = vector.broadcast %cst_60 : f32 to vector<8x128xf32>
      %c0_61 = arith.constant 0 : index
      %c0_62 = arith.constant 0 : index
      %260 = vector.load %arg5[%c0_61, %c0_62] : memref<8x128xf32, #tpu.memory_space<vmem>>, vector<8x128xf32>
      tpu.vector_store %arg5[%c0_61, %c0_62], %259 {strides = array<i32>} : memref<8x128xf32, #tpu.memory_space<vmem>>, vector<8x128xf32>,
      %cst_63 = arith.constant 0.000000e+00 : f32
      %261 = vector.broadcast %cst_63 : f32 to vector<8x128xf32>
      %c0_64 = arith.constant 0 : index
      %c0_65 = arith.constant 0 : index
      %262 = vector.load %arg6[%c0_64, %c0_65] : memref<8x128xf32, #tpu.memory_space<vmem>>, vector<8x128xf32>
      tpu.vector_store %arg6[%c0_64, %c0_65], %261 {strides = array<i32>} : memref<8x128xf32, #tpu.memory_space<vmem>>, vector<8x128xf32>,
    } else {
    }
    %c0 = arith.constant 0 : index
    %c0_1 = arith.constant 0 : index
    %3 = vector.load %arg3[%c0, %c0_1] : memref<128x512xbf16, #tpu.memory_space<vmem>>, vector<128x512xbf16>
    %c0_2 = arith.constant 0 : index
    %c0_3 = arith.constant 0 : index
    %4 = vector.load %arg5[%c0_2, %c0_3] : memref<8x128xf32, #tpu.memory_space<vmem>>, vector<8x128xf32>
    %c0_4 = arith.constant 0 : index
    %c0_5 = arith.constant 0 : index
    %5 = vector.load %arg6[%c0_4, %c0_5] : memref<8x128xf32, #tpu.memory_space<vmem>>, vector<8x128xf32>
    %c0_i32_6 = arith.constant 0 : i32
    %6 = arith.index_cast %c0_i32_6 : i32 to index
    %c0_7 = arith.constant 0 : index
    %c0_8 = arith.constant 0 : index
    %7 = vector.load %arg2[%6, %c0_7, %c0_8] : memref<8x8x512xf32, #tpu.memory_space<vmem>>, vector<1x8x512xf32>
    %8 = vector.shape_cast %7 : vector<1x8x512xf32> to vector<8x512xf32>
    %9 = arith.truncf %4 : vector<8x128xf32> to vector<8x128xbf16>
    %cst = arith.constant dense<0.000000e+00> : vector<8x512xf32>
    %10 = tpu.matmul %9, %3, %cst {dimension_numbers = #tpu.dot_dimension_numbers<[1], [0], [0], [1], [0, 0, 1, 1], [], []>} : vector<8x128xbf16>, vector<128x512xbf16>, vector<8x512xf32> -> vector<8x512xf32>
    %11 = arith.addf %8, %10 : vector<8x512xf32>
    %12 = vector.extract_strided_slice %11 {offsets = [0, 0], sizes = [8, 128], strides = [1, 1]} : vector<8x512xf32> to vector<8x128xf32>
    %13 = arith.negf %12 : vector<8x128xf32>
    %14 = math.exp %13 : vector<8x128xf32>
    %cst_9 = arith.constant 1.000000e+00 : f32
    %15 = vector.broadcast %cst_9 : f32 to vector<8x128xf32>
    %16 = arith.addf %15, %14 : vector<8x128xf32>
    %17 = arith.divf %15, %16 : vector<8x128xf32>
    %18 = vector.extract_strided_slice %11 {offsets = [0, 128], sizes = [8, 128], strides = [1, 1]} : vector<8x512xf32> to vector<8x128xf32>
    %19 = arith.negf %18 : vector<8x128xf32>
    %20 = math.exp %19 : vector<8x128xf32>
    %cst_10 = arith.constant 1.000000e+00 : f32
    %21 = vector.broadcast %cst_10 : f32 to vector<8x128xf32>
    %22 = arith.addf %21, %20 : vector<8x128xf32>
    %23 = arith.divf %21, %22 : vector<8x128xf32>
    %24 = vector.extract_strided_slice %11 {offsets = [0, 256], sizes = [8, 128], strides = [1, 1]} : vector<8x512xf32> to vector<8x128xf32>
    %25 = math.tanh %24 : vector<8x128xf32>
    %26 = vector.extract_strided_slice %11 {offsets = [0, 384], sizes = [8, 128], strides = [1, 1]} : vector<8x512xf32> to vector<8x128xf32>
    %27 = arith.negf %26 : vector<8x128xf32>
    %28 = math.exp %27 : vector<8x128xf32>
    %cst_11 = arith.constant 1.000000e+00 : f32
    %29 = vector.broadcast %cst_11 : f32 to vector<8x128xf32>
    %30 = arith.addf %29, %28 : vector<8x128xf32>
    %31 = arith.divf %29, %30 : vector<8x128xf32>
    %32 = arith.mulf %23, %5 : vector<8x128xf32>
    %33 = arith.mulf %17, %25 : vector<8x128xf32>
    %34 = arith.addf %32, %33 : vector<8x128xf32>
    %35 = math.tanh %34 : vector<8x128xf32>
    %36 = arith.mulf %31, %35 : vector<8x128xf32>
    %c1_i32 = arith.constant 1 : i32
    %37 = arith.index_cast %c1_i32 : i32 to index
    %c0_12 = arith.constant 0 : index
    %c0_13 = arith.constant 0 : index
    %38 = vector.load %arg2[%37, %c0_12, %c0_13] : memref<8x8x512xf32, #tpu.memory_space<vmem>>, vector<1x8x512xf32>
    %39 = vector.shape_cast %38 : vector<1x8x512xf32> to vector<8x512xf32>
    %40 = arith.truncf %36 : vector<8x128xf32> to vector<8x128xbf16>
    %cst_14 = arith.constant dense<0.000000e+00> : vector<8x512xf32>
    %41 = tpu.matmul %40, %3, %cst_14 {dimension_numbers = #tpu.dot_dimension_numbers<[1], [0], [0], [1], [0, 0, 1, 1], [], []>} : vector<8x128xbf16>, vector<128x512xbf16>, vector<8x512xf32> -> vector<8x512xf32>
    %42 = arith.addf %39, %41 : vector<8x512xf32>
    %43 = vector.extract_strided_slice %42 {offsets = [0, 0], sizes = [8, 128], strides = [1, 1]} : vector<8x512xf32> to vector<8x128xf32>
    %44 = arith.negf %43 : vector<8x128xf32>
    %45 = math.exp %44 : vector<8x128xf32>
    %cst_15 = arith.constant 1.000000e+00 : f32
    %46 = vector.broadcast %cst_15 : f32 to vector<8x128xf32>
    %47 = arith.addf %46, %45 : vector<8x128xf32>
    %48 = arith.divf %46, %47 : vector<8x128xf32>
    %49 = vector.extract_strided_slice %42 {offsets = [0, 128], sizes = [8, 128], strides = [1, 1]} : vector<8x512xf32> to vector<8x128xf32>
    %50 = arith.negf %49 : vector<8x128xf32>
    %51 = math.exp %50 : vector<8x128xf32>
    %cst_16 = arith.constant 1.000000e+00 : f32
    %52 = vector.broadcast %cst_16 : f32 to vector<8x128xf32>
    %53 = arith.addf %52, %51 : vector<8x128xf32>
    %54 = arith.divf %52, %53 : vector<8x128xf32>
    %55 = vector.extract_strided_slice %42 {offsets = [0, 256], sizes = [8, 128], strides = [1, 1]} : vector<8x512xf32> to vector<8x128xf32>
    %56 = math.tanh %55 : vector<8x128xf32>
    %57 = vector.extract_strided_slice %42 {offsets = [0, 384], sizes = [8, 128], strides = [1, 1]} : vector<8x512xf32> to vector<8x128xf32>
    %58 = arith.negf %57 : vector<8x128xf32>
    %59 = math.exp %58 : vector<8x128xf32>
    %cst_17 = arith.constant 1.000000e+00 : f32
    %60 = vector.broadcast %cst_17 : f32 to vector<8x128xf32>
    %61 = arith.addf %60, %59 : vector<8x128xf32>
    %62 = arith.divf %60, %61 : vector<8x128xf32>
    %63 = arith.mulf %54, %34 : vector<8x128xf32>
    %64 = arith.mulf %48, %56 : vector<8x128xf32>
    %65 = arith.addf %63, %64 : vector<8x128xf32>
    %66 = math.tanh %65 : vector<8x128xf32>
    %67 = arith.mulf %62, %66 : vector<8x128xf32>
    %c2_i32 = arith.constant 2 : i32
    %68 = arith.index_cast %c2_i32 : i32 to index
    %c0_18 = arith.constant 0 : index
    %c0_19 = arith.constant 0 : index
    %69 = vector.load %arg2[%68, %c0_18, %c0_19] : memref<8x8x512xf32, #tpu.memory_space<vmem>>, vector<1x8x512xf32>
    %70 = vector.shape_cast %69 : vector<1x8x512xf32> to vector<8x512xf32>
    %71 = arith.truncf %67 : vector<8x128xf32> to vector<8x128xbf16>
    %cst_20 = arith.constant dense<0.000000e+00> : vector<8x512xf32>
    %72 = tpu.matmul %71, %3, %cst_20 {dimension_numbers = #tpu.dot_dimension_numbers<[1], [0], [0], [1], [0, 0, 1, 1], [], []>} : vector<8x128xbf16>, vector<128x512xbf16>, vector<8x512xf32> -> vector<8x512xf32>
    %73 = arith.addf %70, %72 : vector<8x512xf32>
    %74 = vector.extract_strided_slice %73 {offsets = [0, 0], sizes = [8, 128], strides = [1, 1]} : vector<8x512xf32> to vector<8x128xf32>
    %75 = arith.negf %74 : vector<8x128xf32>
    %76 = math.exp %75 : vector<8x128xf32>
    %cst_21 = arith.constant 1.000000e+00 : f32
    %77 = vector.broadcast %cst_21 : f32 to vector<8x128xf32>
    %78 = arith.addf %77, %76 : vector<8x128xf32>
    %79 = arith.divf %77, %78 : vector<8x128xf32>
    %80 = vector.extract_strided_slice %73 {offsets = [0, 128], sizes = [8, 128], strides = [1, 1]} : vector<8x512xf32> to vector<8x128xf32>
    %81 = arith.negf %80 : vector<8x128xf32>
    %82 = math.exp %81 : vector<8x128xf32>
    %cst_22 = arith.constant 1.000000e+00 : f32
    %83 = vector.broadcast %cst_22 : f32 to vector<8x128xf32>
    %84 = arith.addf %83, %82 : vector<8x128xf32>
    %85 = arith.divf %83, %84 : vector<8x128xf32>
    %86 = vector.extract_strided_slice %73 {offsets = [0, 256], sizes = [8, 128], strides = [1, 1]} : vector<8x512xf32> to vector<8x128xf32>
    %87 = math.tanh %86 : vector<8x128xf32>
    %88 = vector.extract_strided_slice %73 {offsets = [0, 384], sizes = [8, 128], strides = [1, 1]} : vector<8x512xf32> to vector<8x128xf32>
    %89 = arith.negf %88 : vector<8x128xf32>
    %90 = math.exp %89 : vector<8x128xf32>
    %cst_23 = arith.constant 1.000000e+00 : f32
    %91 = vector.broadcast %cst_23 : f32 to vector<8x128xf32>
    %92 = arith.addf %91, %90 : vector<8x128xf32>
    %93 = arith.divf %91, %92 : vector<8x128xf32>
    %94 = arith.mulf %85, %65 : vector<8x128xf32>
    %95 = arith.mulf %79, %87 : vector<8x128xf32>
    %96 = arith.addf %94, %95 : vector<8x128xf32>
    %97 = math.tanh %96 : vector<8x128xf32>
    %98 = arith.mulf %93, %97 : vector<8x128xf32>
    %c3_i32 = arith.constant 3 : i32
    %99 = arith.index_cast %c3_i32 : i32 to index
    %c0_24 = arith.constant 0 : index
    %c0_25 = arith.constant 0 : index
    %100 = vector.load %arg2[%99, %c0_24, %c0_25] : memref<8x8x512xf32, #tpu.memory_space<vmem>>, vector<1x8x512xf32>
    %101 = vector.shape_cast %100 : vector<1x8x512xf32> to vector<8x512xf32>
    %102 = arith.truncf %98 : vector<8x128xf32> to vector<8x128xbf16>
    %cst_26 = arith.constant dense<0.000000e+00> : vector<8x512xf32>
    %103 = tpu.matmul %102, %3, %cst_26 {dimension_numbers = #tpu.dot_dimension_numbers<[1], [0], [0], [1], [0, 0, 1, 1], [], []>} : vector<8x128xbf16>, vector<128x512xbf16>, vector<8x512xf32> -> vector<8x512xf32>
    %104 = arith.addf %101, %103 : vector<8x512xf32>
    %105 = vector.extract_strided_slice %104 {offsets = [0, 0], sizes = [8, 128], strides = [1, 1]} : vector<8x512xf32> to vector<8x128xf32>
    %106 = arith.negf %105 : vector<8x128xf32>
    %107 = math.exp %106 : vector<8x128xf32>
    %cst_27 = arith.constant 1.000000e+00 : f32
    %108 = vector.broadcast %cst_27 : f32 to vector<8x128xf32>
    %109 = arith.addf %108, %107 : vector<8x128xf32>
    %110 = arith.divf %108, %109 : vector<8x128xf32>
    %111 = vector.extract_strided_slice %104 {offsets = [0, 128], sizes = [8, 128], strides = [1, 1]} : vector<8x512xf32> to vector<8x128xf32>
    %112 = arith.negf %111 : vector<8x128xf32>
    %113 = math.exp %112 : vector<8x128xf32>
    %cst_28 = arith.constant 1.000000e+00 : f32
    %114 = vector.broadcast %cst_28 : f32 to vector<8x128xf32>
    %115 = arith.addf %114, %113 : vector<8x128xf32>
    %116 = arith.divf %114, %115 : vector<8x128xf32>
    %117 = vector.extract_strided_slice %104 {offsets = [0, 256], sizes = [8, 128], strides = [1, 1]} : vector<8x512xf32> to vector<8x128xf32>
    %118 = math.tanh %117 : vector<8x128xf32>
    %119 = vector.extract_strided_slice %104 {offsets = [0, 384], sizes = [8, 128], strides = [1, 1]} : vector<8x512xf32> to vector<8x128xf32>
    %120 = arith.negf %119 : vector<8x128xf32>
    %121 = math.exp %120 : vector<8x128xf32>
    %cst_29 = arith.constant 1.000000e+00 : f32
    %122 = vector.broadcast %cst_29 : f32 to vector<8x128xf32>
    %123 = arith.addf %122, %121 : vector<8x128xf32>
    %124 = arith.divf %122, %123 : vector<8x128xf32>
    %125 = arith.mulf %116, %96 : vector<8x128xf32>
    %126 = arith.mulf %110, %118 : vector<8x128xf32>
    %127 = arith.addf %125, %126 : vector<8x128xf32>
    %128 = math.tanh %127 : vector<8x128xf32>
    %129 = arith.mulf %124, %128 : vector<8x128xf32>
    %c4_i32 = arith.constant 4 : i32
    %130 = arith.index_cast %c4_i32 : i32 to index
    %c0_30 = arith.constant 0 : index
    %c0_31 = arith.constant 0 : index
    %131 = vector.load %arg2[%130, %c0_30, %c0_31] : memref<8x8x512xf32, #tpu.memory_space<vmem>>, vector<1x8x512xf32>
    %132 = vector.shape_cast %131 : vector<1x8x512xf32> to vector<8x512xf32>
    %133 = arith.truncf %129 : vector<8x128xf32> to vector<8x128xbf16>
    %cst_32 = arith.constant dense<0.000000e+00> : vector<8x512xf32>
    %134 = tpu.matmul %133, %3, %cst_32 {dimension_numbers = #tpu.dot_dimension_numbers<[1], [0], [0], [1], [0, 0, 1, 1], [], []>} : vector<8x128xbf16>, vector<128x512xbf16>, vector<8x512xf32> -> vector<8x512xf32>
    %135 = arith.addf %132, %134 : vector<8x512xf32>
    %136 = vector.extract_strided_slice %135 {offsets = [0, 0], sizes = [8, 128], strides = [1, 1]} : vector<8x512xf32> to vector<8x128xf32>
    %137 = arith.negf %136 : vector<8x128xf32>
    %138 = math.exp %137 : vector<8x128xf32>
    %cst_33 = arith.constant 1.000000e+00 : f32
    %139 = vector.broadcast %cst_33 : f32 to vector<8x128xf32>
    %140 = arith.addf %139, %138 : vector<8x128xf32>
    %141 = arith.divf %139, %140 : vector<8x128xf32>
    %142 = vector.extract_strided_slice %135 {offsets = [0, 128], sizes = [8, 128], strides = [1, 1]} : vector<8x512xf32> to vector<8x128xf32>
    %143 = arith.negf %142 : vector<8x128xf32>
    %144 = math.exp %143 : vector<8x128xf32>
    %cst_34 = arith.constant 1.000000e+00 : f32
    %145 = vector.broadcast %cst_34 : f32 to vector<8x128xf32>
    %146 = arith.addf %145, %144 : vector<8x128xf32>
    %147 = arith.divf %145, %146 : vector<8x128xf32>
    %148 = vector.extract_strided_slice %135 {offsets = [0, 256], sizes = [8, 128], strides = [1, 1]} : vector<8x512xf32> to vector<8x128xf32>
    %149 = math.tanh %148 : vector<8x128xf32>
    %150 = vector.extract_strided_slice %135 {offsets = [0, 384], sizes = [8, 128], strides = [1, 1]} : vector<8x512xf32> to vector<8x128xf32>
    %151 = arith.negf %150 : vector<8x128xf32>
    %152 = math.exp %151 : vector<8x128xf32>
    %cst_35 = arith.constant 1.000000e+00 : f32
    %153 = vector.broadcast %cst_35 : f32 to vector<8x128xf32>
    %154 = arith.addf %153, %152 : vector<8x128xf32>
    %155 = arith.divf %153, %154 : vector<8x128xf32>
    %156 = arith.mulf %147, %127 : vector<8x128xf32>
    %157 = arith.mulf %141, %149 : vector<8x128xf32>
    %158 = arith.addf %156, %157 : vector<8x128xf32>
    %159 = math.tanh %158 : vector<8x128xf32>
    %160 = arith.mulf %155, %159 : vector<8x128xf32>
    %c5_i32 = arith.constant 5 : i32
    %161 = arith.index_cast %c5_i32 : i32 to index
    %c0_36 = arith.constant 0 : index
    %c0_37 = arith.constant 0 : index
    %162 = vector.load %arg2[%161, %c0_36, %c0_37] : memref<8x8x512xf32, #tpu.memory_space<vmem>>, vector<1x8x512xf32>
    %163 = vector.shape_cast %162 : vector<1x8x512xf32> to vector<8x512xf32>
    %164 = arith.truncf %160 : vector<8x128xf32> to vector<8x128xbf16>
    %cst_38 = arith.constant dense<0.000000e+00> : vector<8x512xf32>
    %165 = tpu.matmul %164, %3, %cst_38 {dimension_numbers = #tpu.dot_dimension_numbers<[1], [0], [0], [1], [0, 0, 1, 1], [], []>} : vector<8x128xbf16>, vector<128x512xbf16>, vector<8x512xf32> -> vector<8x512xf32>
    %166 = arith.addf %163, %165 : vector<8x512xf32>
    %167 = vector.extract_strided_slice %166 {offsets = [0, 0], sizes = [8, 128], strides = [1, 1]} : vector<8x512xf32> to vector<8x128xf32>
    %168 = arith.negf %167 : vector<8x128xf32>
    %169 = math.exp %168 : vector<8x128xf32>
    %cst_39 = arith.constant 1.000000e+00 : f32
    %170 = vector.broadcast %cst_39 : f32 to vector<8x128xf32>
    %171 = arith.addf %170, %169 : vector<8x128xf32>
    %172 = arith.divf %170, %171 : vector<8x128xf32>
    %173 = vector.extract_strided_slice %166 {offsets = [0, 128], sizes = [8, 128], strides = [1, 1]} : vector<8x512xf32> to vector<8x128xf32>
    %174 = arith.negf %173 : vector<8x128xf32>
    %175 = math.exp %174 : vector<8x128xf32>
    %cst_40 = arith.constant 1.000000e+00 : f32
    %176 = vector.broadcast %cst_40 : f32 to vector<8x128xf32>
    %177 = arith.addf %176, %175 : vector<8x128xf32>
    %178 = arith.divf %176, %177 : vector<8x128xf32>
    %179 = vector.extract_strided_slice %166 {offsets = [0, 256], sizes = [8, 128], strides = [1, 1]} : vector<8x512xf32> to vector<8x128xf32>
    %180 = math.tanh %179 : vector<8x128xf32>
    %181 = vector.extract_strided_slice %166 {offsets = [0, 384], sizes = [8, 128], strides = [1, 1]} : vector<8x512xf32> to vector<8x128xf32>
    %182 = arith.negf %181 : vector<8x128xf32>
    %183 = math.exp %182 : vector<8x128xf32>
    %cst_41 = arith.constant 1.000000e+00 : f32
    %184 = vector.broadcast %cst_41 : f32 to vector<8x128xf32>
    %185 = arith.addf %184, %183 : vector<8x128xf32>
    %186 = arith.divf %184, %185 : vector<8x128xf32>
    %187 = arith.mulf %178, %158 : vector<8x128xf32>
    %188 = arith.mulf %172, %180 : vector<8x128xf32>
    %189 = arith.addf %187, %188 : vector<8x128xf32>
    %190 = math.tanh %189 : vector<8x128xf32>
    %191 = arith.mulf %186, %190 : vector<8x128xf32>
    %c6_i32 = arith.constant 6 : i32
    %192 = arith.index_cast %c6_i32 : i32 to index
    %c0_42 = arith.constant 0 : index
    %c0_43 = arith.constant 0 : index
    %193 = vector.load %arg2[%192, %c0_42, %c0_43] : memref<8x8x512xf32, #tpu.memory_space<vmem>>, vector<1x8x512xf32>
    %194 = vector.shape_cast %193 : vector<1x8x512xf32> to vector<8x512xf32>
    %195 = arith.truncf %191 : vector<8x128xf32> to vector<8x128xbf16>
    %cst_44 = arith.constant dense<0.000000e+00> : vector<8x512xf32>
    %196 = tpu.matmul %195, %3, %cst_44 {dimension_numbers = #tpu.dot_dimension_numbers<[1], [0], [0], [1], [0, 0, 1, 1], [], []>} : vector<8x128xbf16>, vector<128x512xbf16>, vector<8x512xf32> -> vector<8x512xf32>
    %197 = arith.addf %194, %196 : vector<8x512xf32>
    %198 = vector.extract_strided_slice %197 {offsets = [0, 0], sizes = [8, 128], strides = [1, 1]} : vector<8x512xf32> to vector<8x128xf32>
    %199 = arith.negf %198 : vector<8x128xf32>
    %200 = math.exp %199 : vector<8x128xf32>
    %cst_45 = arith.constant 1.000000e+00 : f32
    %201 = vector.broadcast %cst_45 : f32 to vector<8x128xf32>
    %202 = arith.addf %201, %200 : vector<8x128xf32>
    %203 = arith.divf %201, %202 : vector<8x128xf32>
    %204 = vector.extract_strided_slice %197 {offsets = [0, 128], sizes = [8, 128], strides = [1, 1]} : vector<8x512xf32> to vector<8x128xf32>
    %205 = arith.negf %204 : vector<8x128xf32>
    %206 = math.exp %205 : vector<8x128xf32>
    %cst_46 = arith.constant 1.000000e+00 : f32
    %207 = vector.broadcast %cst_46 : f32 to vector<8x128xf32>
    %208 = arith.addf %207, %206 : vector<8x128xf32>
    %209 = arith.divf %207, %208 : vector<8x128xf32>
    %210 = vector.extract_strided_slice %197 {offsets = [0, 256], sizes = [8, 128], strides = [1, 1]} : vector<8x512xf32> to vector<8x128xf32>
    %211 = math.tanh %210 : vector<8x128xf32>
    %212 = vector.extract_strided_slice %197 {offsets = [0, 384], sizes = [8, 128], strides = [1, 1]} : vector<8x512xf32> to vector<8x128xf32>
    %213 = arith.negf %212 : vector<8x128xf32>
    %214 = math.exp %213 : vector<8x128xf32>
    %cst_47 = arith.constant 1.000000e+00 : f32
    %215 = vector.broadcast %cst_47 : f32 to vector<8x128xf32>
    %216 = arith.addf %215, %214 : vector<8x128xf32>
    %217 = arith.divf %215, %216 : vector<8x128xf32>
    %218 = arith.mulf %209, %189 : vector<8x128xf32>
    %219 = arith.mulf %203, %211 : vector<8x128xf32>
    %220 = arith.addf %218, %219 : vector<8x128xf32>
    %221 = math.tanh %220 : vector<8x128xf32>
    %222 = arith.mulf %217, %221 : vector<8x128xf32>
    %c7_i32 = arith.constant 7 : i32
    %223 = arith.index_cast %c7_i32 : i32 to index
    %c0_48 = arith.constant 0 : index
    %c0_49 = arith.constant 0 : index
    %224 = vector.load %arg2[%223, %c0_48, %c0_49] : memref<8x8x512xf32, #tpu.memory_space<vmem>>, vector<1x8x512xf32>
    %225 = vector.shape_cast %224 : vector<1x8x512xf32> to vector<8x512xf32>
    %226 = arith.truncf %222 : vector<8x128xf32> to vector<8x128xbf16>
    %cst_50 = arith.constant dense<0.000000e+00> : vector<8x512xf32>
    %227 = tpu.matmul %226, %3, %cst_50 {dimension_numbers = #tpu.dot_dimension_numbers<[1], [0], [0], [1], [0, 0, 1, 1], [], []>} : vector<8x128xbf16>, vector<128x512xbf16>, vector<8x512xf32> -> vector<8x512xf32>
    %228 = arith.addf %225, %227 : vector<8x512xf32>
    %229 = vector.extract_strided_slice %228 {offsets = [0, 0], sizes = [8, 128], strides = [1, 1]} : vector<8x512xf32> to vector<8x128xf32>
    %230 = arith.negf %229 : vector<8x128xf32>
    %231 = math.exp %230 : vector<8x128xf32>
    %cst_51 = arith.constant 1.000000e+00 : f32
    %232 = vector.broadcast %cst_51 : f32 to vector<8x128xf32>
    %233 = arith.addf %232, %231 : vector<8x128xf32>
    %234 = arith.divf %232, %233 : vector<8x128xf32>
    %235 = vector.extract_strided_slice %228 {offsets = [0, 128], sizes = [8, 128], strides = [1, 1]} : vector<8x512xf32> to vector<8x128xf32>
    %236 = arith.negf %235 : vector<8x128xf32>
    %237 = math.exp %236 : vector<8x128xf32>
    %cst_52 = arith.constant 1.000000e+00 : f32
    %238 = vector.broadcast %cst_52 : f32 to vector<8x128xf32>
    %239 = arith.addf %238, %237 : vector<8x128xf32>
    %240 = arith.divf %238, %239 : vector<8x128xf32>
    %241 = vector.extract_strided_slice %228 {offsets = [0, 256], sizes = [8, 128], strides = [1, 1]} : vector<8x512xf32> to vector<8x128xf32>
    %242 = math.tanh %241 : vector<8x128xf32>
    %243 = vector.extract_strided_slice %228 {offsets = [0, 384], sizes = [8, 128], strides = [1, 1]} : vector<8x512xf32> to vector<8x128xf32>
    %244 = arith.negf %243 : vector<8x128xf32>
    %245 = math.exp %244 : vector<8x128xf32>
    %cst_53 = arith.constant 1.000000e+00 : f32
    %246 = vector.broadcast %cst_53 : f32 to vector<8x128xf32>
    %247 = arith.addf %246, %245 : vector<8x128xf32>
    %248 = arith.divf %246, %247 : vector<8x128xf32>
    %249 = arith.mulf %240, %220 : vector<8x128xf32>
    %250 = arith.mulf %234, %242 : vector<8x128xf32>
    %251 = arith.addf %249, %250 : vector<8x128xf32>
    %252 = math.tanh %251 : vector<8x128xf32>
    %253 = arith.mulf %248, %252 : vector<8x128xf32>
    %c8_i32 = arith.constant 8 : i32
    %c0_54 = arith.constant 0 : index
    %c0_55 = arith.constant 0 : index
    %254 = vector.load %arg5[%c0_54, %c0_55] : memref<8x128xf32, #tpu.memory_space<vmem>>, vector<8x128xf32>
    tpu.vector_store %arg5[%c0_54, %c0_55], %253 {strides = array<i32>} : memref<8x128xf32, #tpu.memory_space<vmem>>, vector<8x128xf32>,
    %c0_56 = arith.constant 0 : index
    %c0_57 = arith.constant 0 : index
    %255 = vector.load %arg6[%c0_56, %c0_57] : memref<8x128xf32, #tpu.memory_space<vmem>>, vector<8x128xf32>
    tpu.vector_store %arg6[%c0_56, %c0_57], %251 {strides = array<i32>} : memref<8x128xf32, #tpu.memory_space<vmem>>, vector<8x128xf32>,
    %c0_i32_58 = arith.constant 0 : i32
    %256 = arith.cmpi eq, %arg1, %c0_i32_58 : i32
    %257 = arith.extui %256 : i1 to i32
    %c0_i32_59 = arith.constant 0 : i32
    %258 = arith.cmpi ne, %257, %c0_i32_59 : i32
    scf.if %258 {
      %c0_60 = arith.constant 0 : index
      %c0_61 = arith.constant 0 : index
      %259 = vector.load %arg4[%c0_60, %c0_61] : memref<8x128xf32, #tpu.memory_space<vmem>>, vector<8x128xf32>
      tpu.vector_store %arg4[%c0_60, %c0_61], %253 {strides = array<i32>} : memref<8x128xf32, #tpu.memory_space<vmem>>, vector<8x128xf32>,
    } else {
    }
    return
  }
  func.func @transform_0(%arg0: i32, %arg1: i32) -> (i32, i32, i32) {
    %c0_i32 = arith.constant 0 : i32
    %c0_i32_0 = arith.constant 0 : i32
    return %arg1, %arg0, %c0_i32 : i32, i32, i32
  }
  func.func @transform_1(%arg0: i32, %arg1: i32) -> (i32, i32) {
    %c0_i32 = arith.constant 0 : i32
    %c0_i32_0 = arith.constant 0 : i32
    %c0_i32_1 = arith.constant 0 : i32
    return %c0_i32, %c0_i32_0 : i32, i32
  }
  func.func @transform_2(%arg0: i32, %arg1: i32) -> (i32, i32) {
    %c0_i32 = arith.constant 0 : i32
    %c0_i32_0 = arith.constant 0 : i32
    return %arg0, %c0_i32 : i32, i32
  }
}

</mosaic_0001>

<llo_original>
// kernel: tpu_custom_call.1
$region0: #{tpu_custom_call.1}
  #allocation0 [shape = 'u32[]', space=smem, size = 0x4, offset = 0x4, fixed_abs, tag = 'smem constant byte address 0x4 - core index']
  #allocation1 [shape = 'u32[144,128]{1,0:T(1,128)}', space=vmem, size = 0x12000, scoped, tag = 'internal scratch']
  #allocation2 [shape = 'f32[8,128]{1,0:T(8,128)}', space=vmem, size = 0x1000, scoped, tag = 'scratch operand']
  #allocation3 [shape = 'f32[8,128]{1,0:T(8,128)}', space=vmem, size = 0x1000, scoped, tag = 'scratch operand']
  %s0 = inlined_call_operand.hbm [shape: f32[8,8,512], index: 0, kind: input, shape index: {}]
  %s1 = inlined_call_operand.hbm [shape: bf16[128,512], index: 1, kind: input, shape index: {}]
  %s2 = inlined_call_operand.hbm [shape: f32[8,128], index: 2, kind: output, shape index: {}]
  %s3 = sld [smem:[#allocation0]]
  $region34: #{tpu_custom_call.1} parent=0
    _
  %s5 = ssub.s32 1, %s3
  %s6 = scalar_select 0, %s5, %s3
  $region1: #{tpu_custom_call.1} parent=0
    #allocation4 [shape = 'u8[131072]{0}', space=vmem, size = 0x20000, scoped, tag = 'input window, operand 0, single buffered']
    #allocation5 [shape = 's32[1]{0}', space=sflag, size = 0x4, scoped, tag = 'scoped memory for tpu_custom_call.1']
    #allocation6 [shape = 's32[1]{0}', space=sflag, size = 0x4, scoped, tag = 'scoped memory for tpu_custom_call.1']
    #allocation7 [shape = 'u8[131072]{0}', space=vmem, size = 0x20000, scoped, tag = 'input window, operand 1, single buffered']
    #allocation8 [shape = 's32[1]{0}', space=sflag, size = 0x4, scoped, tag = 'scoped memory for tpu_custom_call.1']
    #allocation9 [shape = 'u8[4096]{0}', space=vmem, size = 0x1000, scoped, tag = 'output window, operand 0, single buffered']
    %7 = vsyncpa [#allocation5], 0
    %8 = vsyncpa [#allocation8], 0
    %9 = vsyncpa [#allocation6], 0
    // Predicated region
    $region2: #{tpu_custom_call.1} parent=1 // pred_check
      _
    $region3: #{tpu_custom_call.1} parent=1 // pred_check_branch
      %11 = sbr.rel (0) target = $region5
    $region4: #{tpu_custom_call.1} parent=1 // pred_region
      %s13 = ssub.s32 4096, 4096
      %14 = vsyncadd [#allocation5], %s13
      %s15 = sshll.u32 [#allocation4], 4
      %s16 = int_to_ptr.vmem [resolvable:$true] %s15
      %21 = dma.hbm_to_vmem [thread:$0]  %s0, 4096, %s16, [#allocation5], 512, 512, 32
    $region5: #{tpu_custom_call.1} parent=1 // pred_fallthru
      _
    // Predicated region
    $region6: #{tpu_custom_call.1} parent=1 // pred_check
      _
    $region7: #{tpu_custom_call.1} parent=1 // pred_check_branch
      %23 = sbr.rel (0) target = $region9
    $region8: #{tpu_custom_call.1} parent=1 // pred_region
      %s25 = ssub.s32 4096, 4096
      %26 = vsyncadd [#allocation8], %s25
      %s27 = sshll.u32 [#allocation7], 4
      %s28 = int_to_ptr.vmem [resolvable:$true] %s27
      %33 = dma.hbm_to_vmem [thread:$0]  %s1, 4096, %s28, [#allocation8], 256, 256, 16
    $region9: #{tpu_custom_call.1} parent=1 // pred_fallthru
      _
    // Predicated region
    $region10: #{tpu_custom_call.1} parent=1 // pred_check
      _
    $region11: #{tpu_custom_call.1} parent=1 // pred_check_branch
      %35 = sbr.rel (0) target = $region13
    $region12: #{tpu_custom_call.1} parent=1 // pred_region
      %36 = dma.done [#allocation5], 4096
    $region13: #{tpu_custom_call.1} parent=1 // pred_fallthru
      _
    // Predicated region
    $region14: #{tpu_custom_call.1} parent=1 // pred_check
      _
    $region15: #{tpu_custom_call.1} parent=1 // pred_check_branch
      %38 = sbr.rel (0) target = $region17
    $region16: #{tpu_custom_call.1} parent=1 // pred_region
      %39 = dma.done [#allocation8], 4096
    $region17: #{tpu_custom_call.1} parent=1 // pred_fallthru
      _
    %p41 = scmp.eq.s32.totalorder 0, 0
    // Predicated region
    $region18: #{tpu_custom_call.1} parent=1 // pred_check
      %p42 = pneg %p41
    $region19: #{tpu_custom_call.1} parent=1 // pred_check_branch
      %44 = sbr.rel (%p42) target = $region21
    $region20: #{tpu_custom_call.1} parent=1 // pred_region
      %45 = vst [vmem:[#allocation2] sm:$0xff] 0.0
      %46 = vst [vmem:[#allocation3] sm:$0xff] 0.0
    $region21: #{tpu_custom_call.1} parent=1 // pred_fallthru
      _
    %v47 = vld [vmem:[#allocation7] sm:$0xff]
    %v48 = vld [vmem:[#allocation7 + $0x8] sm:$0xff]
    %v49 = vld [vmem:[#allocation7 + $0x10] sm:$0xff]
    %v50 = vld [vmem:[#allocation7 + $0x18] sm:$0xff]
    %v51 = vld [vmem:[#allocation7 + $0x20] sm:$0xff]
    %v52 = vld [vmem:[#allocation7 + $0x28] sm:$0xff]
    %v53 = vld [vmem:[#allocation7 + $0x30] sm:$0xff]
    %v54 = vld [vmem:[#allocation7 + $0x38] sm:$0xff]
    %v55 = vld [vmem:[#allocation7 + $0x40] sm:$0xff]
    %v56 = vld [vmem:[#allocation7 + $0x48] sm:$0xff]
    %v57 = vld [vmem:[#allocation7 + $0x50] sm:$0xff]
    %v58 = vld [vmem:[#allocation7 + $0x58] sm:$0xff]
    %v59 = vld [vmem:[#allocation7 + $0x60] sm:$0xff]
    %v60 = vld [vmem:[#allocation7 + $0x68] sm:$0xff]
    %v61 = vld [vmem:[#allocation7 + $0x70] sm:$0xff]
    %v62 = vld [vmem:[#allocation7 + $0x78] sm:$0xff]
    %v63 = vld [vmem:[#allocation7 + $0x80] sm:$0xff]
    %v64 = vld [vmem:[#allocation7 + $0x88] sm:$0xff]
    %v65 = vld [vmem:[#allocation7 + $0x90] sm:$0xff]
    %v66 = vld [vmem:[#allocation7 + $0x98] sm:$0xff]
    %v67 = vld [vmem:[#allocation7 + $0xa0] sm:$0xff]
    %v68 = vld [vmem:[#allocation7 + $0xa8] sm:$0xff]
    %v69 = vld [vmem:[#allocation7 + $0xb0] sm:$0xff]
    %v70 = vld [vmem:[#allocation7 + $0xb8] sm:$0xff]
    %v71 = vld [vmem:[#allocation7 + $0xc0] sm:$0xff]
    %v72 = vld [vmem:[#allocation7 + $0xc8] sm:$0xff]
    %v73 = vld [vmem:[#allocation7 + $0xd0] sm:$0xff]
    %v74 = vld [vmem:[#allocation7 + $0xd8] sm:$0xff]
    %v75 = vld [vmem:[#allocation7 + $0xe0] sm:$0xff]
    %v76 = vld [vmem:[#allocation7 + $0xe8] sm:$0xff]
    %v77 = vld [vmem:[#allocation7 + $0xf0] sm:$0xff]
    %v78 = vld [vmem:[#allocation7 + $0xf8] sm:$0xff]
    %v79 = vld [vmem:[#allocation2] sm:$0xff]
    %v80 = vld [vmem:[#allocation3] sm:$0xff]
    %v81 = vld [vmem:[#allocation4] sm:$0xff]
    %v82 = vld [vmem:[#allocation4 + $0x8] sm:$0xff]
    %v83 = vld [vmem:[#allocation4 + $0x10] sm:$0xff]
    %v84 = vld [vmem:[#allocation4 + $0x18] sm:$0xff]
    %v85 = vpack.c.bf16 %v79, %v79
    %v118 = vunpack.c.l.b16 %v47
    %v119 = vunpack.c.h.b16 %v47
    %v120 = vunpack.c.l.b16 %v48
    %v121 = vunpack.c.h.b16 %v48
    %v122 = vunpack.c.l.b16 %v49
    %v123 = vunpack.c.h.b16 %v49
    %v124 = vunpack.c.l.b16 %v50
    %v125 = vunpack.c.h.b16 %v50
    %v126 = vunpack.c.l.b16 %v51
    %v127 = vunpack.c.h.b16 %v51
    %v128 = vunpack.c.l.b16 %v52
    %v129 = vunpack.c.h.b16 %v52
    %v130 = vunpack.c.l.b16 %v53
    %v131 = vunpack.c.h.b16 %v53
    %v132 = vunpack.c.l.b16 %v54
    %v133 = vunpack.c.h.b16 %v54
    %v134 = vunpack.c.l.b16 %v55
    %v135 = vunpack.c.h.b16 %v55
    %v136 = vunpack.c.l.b16 %v56
    %v137 = vunpack.c.h.b16 %v56
    %v138 = vunpack.c.l.b16 %v57
    %v139 = vunpack.c.h.b16 %v57
    %v140 = vunpack.c.l.b16 %v58
    %v141 = vunpack.c.h.b16 %v58
    %v142 = vunpack.c.l.b16 %v59
    %v143 = vunpack.c.h.b16 %v59
    %v144 = vunpack.c.l.b16 %v60
    %v145 = vunpack.c.h.b16 %v60
    %v146 = vunpack.c.l.b16 %v61
    %v147 = vunpack.c.h.b16 %v61
    %v148 = vunpack.c.l.b16 %v62
    %v149 = vunpack.c.h.b16 %v62
    %v150 = vunpack.c.l.b16 %v63
    %v151 = vunpack.c.h.b16 %v63
    %v152 = vunpack.c.l.b16 %v64
    %v153 = vunpack.c.h.b16 %v64
    %v154 = vunpack.c.l.b16 %v65
    %v155 = vunpack.c.h.b16 %v65
    %v156 = vunpack.c.l.b16 %v66
    %v157 = vunpack.c.h.b16 %v66
    %v158 = vunpack.c.l.b16 %v67
    %v159 = vunpack.c.h.b16 %v67
    %v160 = vunpack.c.l.b16 %v68
    %v161 = vunpack.c.h.b16 %v68
    %v162 = vunpack.c.l.b16 %v69
    %v163 = vunpack.c.h.b16 %v69
    %v164 = vunpack.c.l.b16 %v70
    %v165 = vunpack.c.h.b16 %v70
    %v166 = vunpack.c.l.b16 %v71
    %v167 = vunpack.c.h.b16 %v71
    %v168 = vunpack.c.l.b16 %v72
    %v169 = vunpack.c.h.b16 %v72
    %v170 = vunpack.c.l.b16 %v73
    %v171 = vunpack.c.h.b16 %v73
    %v172 = vunpack.c.l.b16 %v74
    %v173 = vunpack.c.h.b16 %v74
    %v174 = vunpack.c.l.b16 %v75
    %v175 = vunpack.c.h.b16 %v75
    %v176 = vunpack.c.l.b16 %v76
    %v177 = vunpack.c.h.b16 %v76
    %v178 = vunpack.c.l.b16 %v77
    %v179 = vunpack.c.h.b16 %v77
    %v180 = vunpack.c.l.b16 %v78
    %v181 = vunpack.c.h.b16 %v78
    %v182 = vpack.c.b16 %v122, %v118
    %v183 = vpack.c.b16 %v123, %v119
    %v184 = vpack.c.b16 %v124, %v120
    %v185 = vpack.c.b16 %v125, %v121
    %v186 = vpack.c.b16 %v130, %v126
    %v187 = vpack.c.b16 %v131, %v127
    %v188 = vpack.c.b16 %v132, %v128
    %v189 = vpack.c.b16 %v133, %v129
    %v190 = vpack.c.b16 %v138, %v134
    %v191 = vpack.c.b16 %v139, %v135
    %v192 = vpack.c.b16 %v140, %v136
    %v193 = vpack.c.b16 %v141, %v137
    %v194 = vpack.c.b16 %v146, %v142
    %v195 = vpack.c.b16 %v147, %v143
    %v196 = vpack.c.b16 %v148, %v144
    %v197 = vpack.c.b16 %v149, %v145
    %v198 = vpack.c.b16 %v154, %v150
    %v199 = vpack.c.b16 %v155, %v151
    %v200 = vpack.c.b16 %v156, %v152
    %v201 = vpack.c.b16 %v157, %v153
    %v202 = vpack.c.b16 %v162, %v158
    %v203 = vpack.c.b16 %v163, %v159
    %v204 = vpack.c.b16 %v164, %v160
    %v205 = vpack.c.b16 %v165, %v161
    %v206 = vpack.c.b16 %v170, %v166
    %v207 = vpack.c.b16 %v171, %v167
    %v208 = vpack.c.b16 %v172, %v168
    %v209 = vpack.c.b16 %v173, %v169
    %v210 = vpack.c.b16 %v178, %v174
    %v211 = vpack.c.b16 %v179, %v175
    %v212 = vpack.c.b16 %v180, %v176
    %v213 = vpack.c.b16 %v181, %v177
    %246 = vmatprep.subr.bf16.mxu0 %v183
    %247 = vmatpush1.bf16.msra.mxu0 %v182
    %248 = vmatprep.subr.bf16.mxu0 %v187
    %249 = vmatpush1.bf16.msra.mxu0 %v186
    %250 = vmatprep.subr.bf16.mxu0 %v191
    %251 = vmatpush1.bf16.msra.mxu0 %v190
    %252 = vmatprep.subr.bf16.mxu0 %v195
    %253 = vmatpush1.bf16.msra.mxu0 %v194
    %254 = vmatprep.subr.bf16.mxu0 %v199
    %255 = vmatpush1.bf16.msra.mxu0 %v198
    %256 = vmatprep.subr.bf16.mxu0 %v203
    %257 = vmatpush1.bf16.msra.mxu0 %v202
    %258 = vmatprep.subr.bf16.mxu0 %v207
    %259 = vmatpush1.bf16.msra.mxu0 %v206
    %260 = vmatprep.subr.bf16.mxu0 %v211
    %261 = vmatpush1.bf16.msra.mxu0 %v210
    %262 = vmatprep.subr.bf16.mxu0 0
    %263 = vmatpush1.bf16.msra.mxu0 0
    %264 = vmatprep.subr.bf16.mxu0 0
    %265 = vmatpush1.bf16.msra.mxu0 0
    %266 = vmatprep.subr.bf16.mxu0 0
    %267 = vmatpush1.bf16.msra.mxu0 0
    %268 = vmatprep.subr.bf16.mxu0 0
    %269 = vmatpush1.bf16.msra.mxu0 0
    %270 = vmatprep.subr.bf16.mxu0 0
    %271 = vmatpush1.bf16.msra.mxu0 0
    %272 = vmatprep.subr.bf16.mxu0 0
    %273 = vmatpush1.bf16.msra.mxu0 0
    %274 = vmatprep.subr.bf16.mxu0 0
    %275 = vmatpush1.bf16.msra.mxu0 0
    %276 = vmatprep.subr.bf16.mxu0 0
    %277 = vmatpush1.bf16.msra.mxu0 0
    %278 = vmatprep.mubr.bf16.mxu0 0
    %279 = vmatmul.mubr.bf16.gmra.mrb[0].mxu0 %v85
    %v280 = vpop.f32.mrb[0].mxu0
    %v281 = vadd.f32 0.0, %v280
    %v282 = vpop.f32.mrb[0].mxu0
    %v283 = vadd.f32 0.0, %v282
    %v284 = vpop.f32.mrb[0].mxu0
    %v285 = vpop.f32.mrb[0].mxu0
    %286 = vdwg.mxu0
    %287 = vmatprep.subr.bf16.mxu0 %v185
    %288 = vmatpush1.bf16.msra.mxu0 %v184
    %289 = vmatprep.subr.bf16.mxu0 %v189
    %290 = vmatpush1.bf16.msra.mxu0 %v188
    %291 = vmatprep.subr.bf16.mxu0 %v193
    %292 = vmatpush1.bf16.msra.mxu0 %v192
    %293 = vmatprep.subr.bf16.mxu0 %v197
    %294 = vmatpush1.bf16.msra.mxu0 %v196
    %295 = vmatprep.subr.bf16.mxu0 %v201
    %296 = vmatpush1.bf16.msra.mxu0 %v200
    %297 = vmatprep.subr.bf16.mxu0 %v205
    %298 = vmatpush1.bf16.msra.mxu0 %v204
    %299 = vmatprep.subr.bf16.mxu0 %v209
    %300 = vmatpush1.bf16.msra.mxu0 %v208
    %301 = vmatprep.subr.bf16.mxu0 %v213
    %302 = vmatpush1.bf16.msra.mxu0 %v212
    %303 = vmatprep.subr.bf16.mxu0 0
    %304 = vmatpush1.bf16.msra.mxu0 0
    %305 = vmatprep.subr.bf16.mxu0 0
    %306 = vmatpush1.bf16.msra.mxu0 0
    %307 = vmatprep.subr.bf16.mxu0 0
    %308 = vmatpush1.bf16.msra.mxu0 0
    %309 = vmatprep.subr.bf16.mxu0 0
    %310 = vmatpush1.bf16.msra.mxu0 0
    %311 = vmatprep.subr.bf16.mxu0 0
    %312 = vmatpush1.bf16.msra.mxu0 0
    %313 = vmatprep.subr.bf16.mxu0 0
    %314 = vmatpush1.bf16.msra.mxu0 0
    %315 = vmatprep.subr.bf16.mxu0 0
    %316 = vmatpush1.bf16.msra.mxu0 0
    %317 = vmatprep.subr.bf16.mxu0 0
    %318 = vmatpush1.bf16.msra.mxu0 0
    %319 = vmatprep.mubr.bf16.mxu0 0
    %320 = vmatmul.mubr.bf16.gmra.mrb[0].mxu0 %v85
    %v321 = vpop.f32.mrb[0].mxu0
    %v322 = vadd.f32 0.0, %v321
    %v323 = vpop.f32.mrb[0].mxu0
    %v324 = vadd.f32 0.0, %v323
    %v325 = vpop.f32.mrb[0].mxu0
    %v326 = vpop.f32.mrb[0].mxu0
    %327 = vdwg.mxu0
    %v328 = vadd.f32 %v81, %v281
    %v329 = vadd.f32 %v82, %v283
    %v330 = vadd.f32 %v83, %v322
    %v331 = vadd.f32 %v84, %v324
    %v332 = vxor.u32 %v328, 2147483648
    %v333 = vmul.f32 %v332, 1.442695
    %v334 = vpow.pop %v333
    %v335 = vadd.f32 %v334, 1.0
    %v336 = vrcp.pop %v335
    %v337 = vmul.f32 1.0, %v336
    %v338 = vxor.u32 %v329, 2147483648
    %v339 = vmul.f32 %v338, 1.442695
    %v340 = vpow.pop %v339
    %v341 = vadd.f32 %v340, 1.0
    %v342 = vrcp.pop %v341
    %v343 = vmul.f32 1.0, %v342
    %v344 = vtanh.pop %v330
    %v345 = vxor.u32 %v331, 2147483648
    %v346 = vmul.f32 %v345, 1.442695
    %v347 = vpow.pop %v346
    %v348 = vadd.f32 %v347, 1.0
    %v349 = vrcp.pop %v348
    %v350 = vmul.f32 1.0, %v349
    %v351 = vmul.f32 %v343, %v80
    %v352 = vmul.f32 %v337, %v344
    %v353 = vadd.f32 %v351, %v352
    %v354 = vtanh.pop %v353
    %v355 = vmul.f32 %v350, %v354
    %s356 = scalar_lea.vmem [#allocation4], 32
    %v357 = vld [vmem:[%s356] sm:$0xff]
    %v358 = vld [vmem:[%s356 + $0x8] sm:$0xff]
    %v359 = vld [vmem:[%s356 + $0x10] sm:$0xff]
    %v360 = vld [vmem:[%s356 + $0x18] sm:$0xff]
    %v361 = vpack.c.bf16 %v355, %v355
    %362 = vmatprep.subr.bf16.mxu0 %v183
    %363 = vmatpush1.bf16.msra.mxu0 %v182
    %364 = vmatprep.subr.bf16.mxu0 %v187
    %365 = vmatpush1.bf16.msra.mxu0 %v186
    %366 = vmatprep.subr.bf16.mxu0 %v191
    %367 = vmatpush1.bf16.msra.mxu0 %v190
    %368 = vmatprep.subr.bf16.mxu0 %v195
    %369 = vmatpush1.bf16.msra.mxu0 %v194
    %370 = vmatprep.subr.bf16.mxu0 %v199
    %371 = vmatpush1.bf16.msra.mxu0 %v198
    %372 = vmatprep.subr.bf16.mxu0 %v203
    %373 = vmatpush1.bf16.msra.mxu0 %v202
    %374 = vmatprep.subr.bf16.mxu0 %v207
    %375 = vmatpush1.bf16.msra.mxu0 %v206
    %376 = vmatprep.subr.bf16.mxu0 %v211
    %377 = vmatpush1.bf16.msra.mxu0 %v210
    %378 = vmatprep.subr.bf16.mxu0 0
    %379 = vmatpush1.bf16.msra.mxu0 0
    %380 = vmatprep.subr.bf16.mxu0 0
    %381 = vmatpush1.bf16.msra.mxu0 0
    %382 = vmatprep.subr.bf16.mxu0 0
    %383 = vmatpush1.bf16.msra.mxu0 0
    %384 = vmatprep.subr.bf16.mxu0 0
    %385 = vmatpush1.bf16.msra.mxu0 0
    %386 = vmatprep.subr.bf16.mxu0 0
    %387 = vmatpush1.bf16.msra.mxu0 0
    %388 = vmatprep.subr.bf16.mxu0 0
    %389 = vmatpush1.bf16.msra.mxu0 0
    %390 = vmatprep.subr.bf16.mxu0 0
    %391 = vmatpush1.bf16.msra.mxu0 0
    %392 = vmatprep.subr.bf16.mxu0 0
    %393 = vmatpush1.bf16.msra.mxu0 0
    %394 = vmatprep.mubr.bf16.mxu0 0
    %395 = vmatmul.mubr.bf16.gmra.mrb[0].mxu0 %v361
    %v396 = vpop.f32.mrb[0].mxu0
    %v397 = vadd.f32 0.0, %v396
    %v398 = vpop.f32.mrb[0].mxu0
    %v399 = vadd.f32 0.0, %v398
    %v400 = vpop.f32.mrb[0].mxu0
    %v401 = vpop.f32.mrb[0].mxu0
    %402 = vdwg.mxu0
    %403 = vmatprep.subr.bf16.mxu0 %v185
    %404 = vmatpush1.bf16.msra.mxu0 %v184
    %405 = vmatprep.subr.bf16.mxu0 %v189
    %406 = vmatpush1.bf16.msra.mxu0 %v188
    %407 = vmatprep.subr.bf16.mxu0 %v193
    %408 = vmatpush1.bf16.msra.mxu0 %v192
    %409 = vmatprep.subr.bf16.mxu0 %v197
    %410 = vmatpush1.bf16.msra.mxu0 %v196
    %411 = vmatprep.subr.bf16.mxu0 %v201
    %412 = vmatpush1.bf16.msra.mxu0 %v200
    %413 = vmatprep.subr.bf16.mxu0 %v205
    %414 = vmatpush1.bf16.msra.mxu0 %v204
    %415 = vmatprep.subr.bf16.mxu0 %v209
    %416 = vmatpush1.bf16.msra.mxu0 %v208
    %417 = vmatprep.subr.bf16.mxu0 %v213
    %418 = vmatpush1.bf16.msra.mxu0 %v212
    %419 = vmatprep.subr.bf16.mxu0 0
    %420 = vmatpush1.bf16.msra.mxu0 0
    %421 = vmatprep.subr.bf16.mxu0 0
    %422 = vmatpush1.bf16.msra.mxu0 0
    %423 = vmatprep.subr.bf16.mxu0 0
    %424 = vmatpush1.bf16.msra.mxu0 0
    %425 = vmatprep.subr.bf16.mxu0 0
    %426 = vmatpush1.bf16.msra.mxu0 0
    %427 = vmatprep.subr.bf16.mxu0 0
    %428 = vmatpush1.bf16.msra.mxu0 0
    %429 = vmatprep.subr.bf16.mxu0 0
    %430 = vmatpush1.bf16.msra.mxu0 0
    %431 = vmatprep.subr.bf16.mxu0 0
    %432 = vmatpush1.bf16.msra.mxu0 0
    %433 = vmatprep.subr.bf16.mxu0 0
    %434 = vmatpush1.bf16.msra.mxu0 0
    %435 = vmatprep.mubr.bf16.mxu0 0
    %436 = vmatmul.mubr.bf16.gmra.mrb[0].mxu0 %v361
    %v437 = vpop.f32.mrb[0].mxu0
    %v438 = vadd.f32 0.0, %v437
    %v439 = vpop.f32.mrb[0].mxu0
    %v440 = vadd.f32 0.0, %v439
    %v441 = vpop.f32.mrb[0].mxu0
    %v442 = vpop.f32.mrb[0].mxu0
    %443 = vdwg.mxu0
    %v444 = vadd.f32 %v357, %v397
    %v445 = vadd.f32 %v358, %v399
    %v446 = vadd.f32 %v359, %v438
    %v447 = vadd.f32 %v360, %v440
    %v448 = vxor.u32 %v444, 2147483648
    %v449 = vmul.f32 %v448, 1.442695
    %v450 = vpow.pop %v449
    %v451 = vadd.f32 %v450, 1.0
    %v452 = vrcp.pop %v451
    %v453 = vmul.f32 1.0, %v452
    %v454 = vxor.u32 %v445, 2147483648
    %v455 = vmul.f32 %v454, 1.442695
    %v456 = vpow.pop %v455
    %v457 = vadd.f32 %v456, 1.0
    %v458 = vrcp.pop %v457
    %v459 = vmul.f32 1.0, %v458
    %v460 = vtanh.pop %v446
    %v461 = vxor.u32 %v447, 2147483648
    %v462 = vmul.f32 %v461, 1.442695
    %v463 = vpow.pop %v462
    %v464 = vadd.f32 %v463, 1.0
    %v465 = vrcp.pop %v464
    %v466 = vmul.f32 1.0, %v465
    %v467 = vmul.f32 %v459, %v353
    %v468 = vmul.f32 %v453, %v460
    %v469 = vadd.f32 %v467, %v468
    %v470 = vtanh.pop %v469
    %v471 = vmul.f32 %v466, %v470
    %s472 = scalar_lea.vmem [#allocation4], 64
    %v473 = vld [vmem:[%s472] sm:$0xff]
    %v474 = vld [vmem:[%s472 + $0x8] sm:$0xff]
    %v475 = vld [vmem:[%s472 + $0x10] sm:$0xff]
    %v476 = vld [vmem:[%s472 + $0x18] sm:$0xff]
    %v477 = vpack.c.bf16 %v471, %v471
    %478 = vmatprep.subr.bf16.mxu0 %v183
    %479 = vmatpush1.bf16.msra.mxu0 %v182
    %480 = vmatprep.subr.bf16.mxu0 %v187
    %481 = vmatpush1.bf16.msra.mxu0 %v186
    %482 = vmatprep.subr.bf16.mxu0 %v191
    %483 = vmatpush1.bf16.msra.mxu0 %v190
    %484 = vmatprep.subr.bf16.mxu0 %v195
    %485 = vmatpush1.bf16.msra.mxu0 %v194
    %486 = vmatprep.subr.bf16.mxu0 %v199
    %487 = vmatpush1.bf16.msra.mxu0 %v198
    %488 = vmatprep.subr.bf16.mxu0 %v203
    %489 = vmatpush1.bf16.msra.mxu0 %v202
    %490 = vmatprep.subr.bf16.mxu0 %v207
    %491 = vmatpush1.bf16.msra.mxu0 %v206
    %492 = vmatprep.subr.bf16.mxu0 %v211
    %493 = vmatpush1.bf16.msra.mxu0 %v210
    %494 = vmatprep.subr.bf16.mxu0 0
    %495 = vmatpush1.bf16.msra.mxu0 0
    %496 = vmatprep.subr.bf16.mxu0 0
    %497 = vmatpush1.bf16.msra.mxu0 0
    %498 = vmatprep.subr.bf16.mxu0 0
    %499 = vmatpush1.bf16.msra.mxu0 0
    %500 = vmatprep.subr.bf16.mxu0 0
    %501 = vmatpush1.bf16.msra.mxu0 0
    %502 = vmatprep.subr.bf16.mxu0 0
    %503 = vmatpush1.bf16.msra.mxu0 0
    %504 = vmatprep.subr.bf16.mxu0 0
    %505 = vmatpush1.bf16.msra.mxu0 0
    %506 = vmatprep.subr.bf16.mxu0 0
    %507 = vmatpush1.bf16.msra.mxu0 0
    %508 = vmatprep.subr.bf16.mxu0 0
    %509 = vmatpush1.bf16.msra.mxu0 0
    %510 = vmatprep.mubr.bf16.mxu0 0
    %511 = vmatmul.mubr.bf16.gmra.mrb[0].mxu0 %v477
    %v512 = vpop.f32.mrb[0].mxu0
    %v513 = vadd.f32 0.0, %v512
    %v514 = vpop.f32.mrb[0].mxu0
    %v515 = vadd.f32 0.0, %v514
    %v516 = vpop.f32.mrb[0].mxu0
    %v517 = vpop.f32.mrb[0].mxu0
    %518 = vdwg.mxu0
    %519 = vmatprep.subr.bf16.mxu0 %v185
    %520 = vmatpush1.bf16.msra.mxu0 %v184
    %521 = vmatprep.subr.bf16.mxu0 %v189
    %522 = vmatpush1.bf16.msra.mxu0 %v188
    %523 = vmatprep.subr.bf16.mxu0 %v193
    %524 = vmatpush1.bf16.msra.mxu0 %v192
    %525 = vmatprep.subr.bf16.mxu0 %v197
    %526 = vmatpush1.bf16.msra.mxu0 %v196
    %527 = vmatprep.subr.bf16.mxu0 %v201
    %528 = vmatpush1.bf16.msra.mxu0 %v200
    %529 = vmatprep.subr.bf16.mxu0 %v205
    %530 = vmatpush1.bf16.msra.mxu0 %v204
    %531 = vmatprep.subr.bf16.mxu0 %v209
    %532 = vmatpush1.bf16.msra.mxu0 %v208
    %533 = vmatprep.subr.bf16.mxu0 %v213
    %534 = vmatpush1.bf16.msra.mxu0 %v212
    %535 = vmatprep.subr.bf16.mxu0 0
    %536 = vmatpush1.bf16.msra.mxu0 0
    %537 = vmatprep.subr.bf16.mxu0 0
    %538 = vmatpush1.bf16.msra.mxu0 0
    %539 = vmatprep.subr.bf16.mxu0 0
    %540 = vmatpush1.bf16.msra.mxu0 0
    %541 = vmatprep.subr.bf16.mxu0 0
    %542 = vmatpush1.bf16.msra.mxu0 0
    %543 = vmatprep.subr.bf16.mxu0 0
    %544 = vmatpush1.bf16.msra.mxu0 0
    %545 = vmatprep.subr.bf16.mxu0 0
    %546 = vmatpush1.bf16.msra.mxu0 0
    %547 = vmatprep.subr.bf16.mxu0 0
    %548 = vmatpush1.bf16.msra.mxu0 0
    %549 = vmatprep.subr.bf16.mxu0 0
    %550 = vmatpush1.bf16.msra.mxu0 0
    %551 = vmatprep.mubr.bf16.mxu0 0
    %552 = vmatmul.mubr.bf16.gmra.mrb[0].mxu0 %v477
    %v553 = vpop.f32.mrb[0].mxu0
    %v554 = vadd.f32 0.0, %v553
    %v555 = vpop.f32.mrb[0].mxu0
    %v556 = vadd.f32 0.0, %v555
    %v557 = vpop.f32.mrb[0].mxu0
    %v558 = vpop.f32.mrb[0].mxu0
    %559 = vdwg.mxu0
    %v560 = vadd.f32 %v473, %v513
    %v561 = vadd.f32 %v474, %v515
    %v562 = vadd.f32 %v475, %v554
    %v563 = vadd.f32 %v476, %v556
    %v564 = vxor.u32 %v560, 2147483648
    %v565 = vmul.f32 %v564, 1.442695
    %v566 = vpow.pop %v565
    %v567 = vadd.f32 %v566, 1.0
    %v568 = vrcp.pop %v567
    %v569 = vmul.f32 1.0, %v568
    %v570 = vxor.u32 %v561, 2147483648
    %v571 = vmul.f32 %v570, 1.442695
    %v572 = vpow.pop %v571
    %v573 = vadd.f32 %v572, 1.0
    %v574 = vrcp.pop %v573
    %v575 = vmul.f32 1.0, %v574
    %v576 = vtanh.pop %v562
    %v577 = vxor.u32 %v563, 2147483648
    %v578 = vmul.f32 %v577, 1.442695
    %v579 = vpow.pop %v578
    %v580 = vadd.f32 %v579, 1.0
    %v581 = vrcp.pop %v580
    %v582 = vmul.f32 1.0, %v581
    %v583 = vmul.f32 %v575, %v469
    %v584 = vmul.f32 %v569, %v576
    %v585 = vadd.f32 %v583, %v584
    %v586 = vtanh.pop %v585
    %v587 = vmul.f32 %v582, %v586
    %s588 = scalar_lea.vmem [#allocation4], 96
    %v589 = vld [vmem:[%s588] sm:$0xff]
    %v590 = vld [vmem:[%s588 + $0x8] sm:$0xff]
    %v591 = vld [vmem:[%s588 + $0x10] sm:$0xff]
    %v592 = vld [vmem:[%s588 + $0x18] sm:$0xff]
    %v593 = vpack.c.bf16 %v587, %v587
    %594 = vmatprep.subr.bf16.mxu0 %v183
    %595 = vmatpush1.bf16.msra.mxu0 %v182
    %596 = vmatprep.subr.bf16.mxu0 %v187
    %597 = vmatpush1.bf16.msra.mxu0 %v186
    %598 = vmatprep.subr.bf16.mxu0 %v191
    %599 = vmatpush1.bf16.msra.mxu0 %v190
    %600 = vmatprep.subr.bf16.mxu0 %v195
    %601 = vmatpush1.bf16.msra.mxu0 %v194
    %602 = vmatprep.subr.bf16.mxu0 %v199
    %603 = vmatpush1.bf16.msra.mxu0 %v198
    %604 = vmatprep.subr.bf16.mxu0 %v203
    %605 = vmatpush1.bf16.msra.mxu0 %v202
    %606 = vmatprep.subr.bf16.mxu0 %v207
    %607 = vmatpush1.bf16.msra.mxu0 %v206
    %608 = vmatprep.subr.bf16.mxu0 %v211
    %609 = vmatpush1.bf16.msra.mxu0 %v210
    %610 = vmatprep.subr.bf16.mxu0 0
    %611 = vmatpush1.bf16.msra.mxu0 0
    %612 = vmatprep.subr.bf16.mxu0 0
    %613 = vmatpush1.bf16.msra.mxu0 0
    %614 = vmatprep.subr.bf16.mxu0 0
    %615 = vmatpush1.bf16.msra.mxu0 0
    %616 = vmatprep.subr.bf16.mxu0 0
    %617 = vmatpush1.bf16.msra.mxu0 0
    %618 = vmatprep.subr.bf16.mxu0 0
    %619 = vmatpush1.bf16.msra.mxu0 0
    %620 = vmatprep.subr.bf16.mxu0 0
    %621 = vmatpush1.bf16.msra.mxu0 0
    %622 = vmatprep.subr.bf16.mxu0 0
    %623 = vmatpush1.bf16.msra.mxu0 0
    %624 = vmatprep.subr.bf16.mxu0 0
    %625 = vmatpush1.bf16.msra.mxu0 0
    %626 = vmatprep.mubr.bf16.mxu0 0
    %627 = vmatmul.mubr.bf16.gmra.mrb[0].mxu0 %v593
    %v628 = vpop.f32.mrb[0].mxu0
    %v629 = vadd.f32 0.0, %v628
    %v630 = vpop.f32.mrb[0].mxu0
    %v631 = vadd.f32 0.0, %v630
    %v632 = vpop.f32.mrb[0].mxu0
    %v633 = vpop.f32.mrb[0].mxu0
    %634 = vdwg.mxu0
    %635 = vmatprep.subr.bf16.mxu0 %v185
    %636 = vmatpush1.bf16.msra.mxu0 %v184
    %637 = vmatprep.subr.bf16.mxu0 %v189
    %638 = vmatpush1.bf16.msra.mxu0 %v188
    %639 = vmatprep.subr.bf16.mxu0 %v193
    %640 = vmatpush1.bf16.msra.mxu0 %v192
    %641 = vmatprep.subr.bf16.mxu0 %v197
    %642 = vmatpush1.bf16.msra.mxu0 %v196
    %643 = vmatprep.subr.bf16.mxu0 %v201
    %644 = vmatpush1.bf16.msra.mxu0 %v200
    %645 = vmatprep.subr.bf16.mxu0 %v205
    %646 = vmatpush1.bf16.msra.mxu0 %v204
    %647 = vmatprep.subr.bf16.mxu0 %v209
    %648 = vmatpush1.bf16.msra.mxu0 %v208
    %649 = vmatprep.subr.bf16.mxu0 %v213
    %650 = vmatpush1.bf16.msra.mxu0 %v212
    %651 = vmatprep.subr.bf16.mxu0 0
    %652 = vmatpush1.bf16.msra.mxu0 0
    %653 = vmatprep.subr.bf16.mxu0 0
    %654 = vmatpush1.bf16.msra.mxu0 0
    %655 = vmatprep.subr.bf16.mxu0 0
    %656 = vmatpush1.bf16.msra.mxu0 0
    %657 = vmatprep.subr.bf16.mxu0 0
    %658 = vmatpush1.bf16.msra.mxu0 0
    %659 = vmatprep.subr.bf16.mxu0 0
    %660 = vmatpush1.bf16.msra.mxu0 0
    %661 = vmatprep.subr.bf16.mxu0 0
    %662 = vmatpush1.bf16.msra.mxu0 0
    %663 = vmatprep.subr.bf16.mxu0 0
    %664 = vmatpush1.bf16.msra.mxu0 0
    %665 = vmatprep.subr.bf16.mxu0 0
    %666 = vmatpush1.bf16.msra.mxu0 0
    %667 = vmatprep.mubr.bf16.mxu0 0
    %668 = vmatmul.mubr.bf16.gmra.mrb[0].mxu0 %v593
    %v669 = vpop.f32.mrb[0].mxu0
    %v670 = vadd.f32 0.0, %v669
    %v671 = vpop.f32.mrb[0].mxu0
    %v672 = vadd.f32 0.0, %v671
    %v673 = vpop.f32.mrb[0].mxu0
    %v674 = vpop.f32.mrb[0].mxu0
    %675 = vdwg.mxu0
    %v676 = vadd.f32 %v589, %v629
    %v677 = vadd.f32 %v590, %v631
    %v678 = vadd.f32 %v591, %v670
    %v679 = vadd.f32 %v592, %v672
    %v680 = vxor.u32 %v676, 2147483648
    %v681 = vmul.f32 %v680, 1.442695
    %v682 = vpow.pop %v681
    %v683 = vadd.f32 %v682, 1.0
    %v684 = vrcp.pop %v683
    %v685 = vmul.f32 1.0, %v684
    %v686 = vxor.u32 %v677, 2147483648
    %v687 = vmul.f32 %v686, 1.442695
    %v688 = vpow.pop %v687
    %v689 = vadd.f32 %v688, 1.0
    %v690 = vrcp.pop %v689
    %v691 = vmul.f32 1.0, %v690
    %v692 = vtanh.pop %v678
    %v693 = vxor.u32 %v679, 2147483648
    %v694 = vmul.f32 %v693, 1.442695
    %v695 = vpow.pop %v694
    %v696 = vadd.f32 %v695, 1.0
    %v697 = vrcp.pop %v696
    %v698 = vmul.f32 1.0, %v697
    %v699 = vmul.f32 %v691, %v585
    %v700 = vmul.f32 %v685, %v692
    %v701 = vadd.f32 %v699, %v700
    %v702 = vtanh.pop %v701
    %v703 = vmul.f32 %v698, %v702
    %s704 = scalar_lea.vmem [#allocation4], 128
    %v705 = vld [vmem:[%s704] sm:$0xff]
    %v706 = vld [vmem:[%s704 + $0x8] sm:$0xff]
    %v707 = vld [vmem:[%s704 + $0x10] sm:$0xff]
    %v708 = vld [vmem:[%s704 + $0x18] sm:$0xff]
    %v709 = vpack.c.bf16 %v703, %v703
    %710 = vmatprep.subr.bf16.mxu0 %v183
    %711 = vmatpush1.bf16.msra.mxu0 %v182
    %712 = vmatprep.subr.bf16.mxu0 %v187
    %713 = vmatpush1.bf16.msra.mxu0 %v186
    %714 = vmatprep.subr.bf16.mxu0 %v191
    %715 = vmatpush1.bf16.msra.mxu0 %v190
    %716 = vmatprep.subr.bf16.mxu0 %v195
    %717 = vmatpush1.bf16.msra.mxu0 %v194
    %718 = vmatprep.subr.bf16.mxu0 %v199
    %719 = vmatpush1.bf16.msra.mxu0 %v198
    %720 = vmatprep.subr.bf16.mxu0 %v203
    %721 = vmatpush1.bf16.msra.mxu0 %v202
    %722 = vmatprep.subr.bf16.mxu0 %v207
    %723 = vmatpush1.bf16.msra.mxu0 %v206
    %724 = vmatprep.subr.bf16.mxu0 %v211
    %725 = vmatpush1.bf16.msra.mxu0 %v210
    %726 = vmatprep.subr.bf16.mxu0 0
    %727 = vmatpush1.bf16.msra.mxu0 0
    %728 = vmatprep.subr.bf16.mxu0 0
    %729 = vmatpush1.bf16.msra.mxu0 0
    %730 = vmatprep.subr.bf16.mxu0 0
    %731 = vmatpush1.bf16.msra.mxu0 0
    %732 = vmatprep.subr.bf16.mxu0 0
    %733 = vmatpush1.bf16.msra.mxu0 0
    %734 = vmatprep.subr.bf16.mxu0 0
    %735 = vmatpush1.bf16.msra.mxu0 0
    %736 = vmatprep.subr.bf16.mxu0 0
    %737 = vmatpush1.bf16.msra.mxu0 0
    %738 = vmatprep.subr.bf16.mxu0 0
    %739 = vmatpush1.bf16.msra.mxu0 0
    %740 = vmatprep.subr.bf16.mxu0 0
    %741 = vmatpush1.bf16.msra.mxu0 0
    %742 = vmatprep.mubr.bf16.mxu0 0
    %743 = vmatmul.mubr.bf16.gmra.mrb[0].mxu0 %v709
    %v744 = vpop.f32.mrb[0].mxu0
    %v745 = vadd.f32 0.0, %v744
    %v746 = vpop.f32.mrb[0].mxu0
    %v747 = vadd.f32 0.0, %v746
    %v748 = vpop.f32.mrb[0].mxu0
    %v749 = vpop.f32.mrb[0].mxu0
    %750 = vdwg.mxu0
    %751 = vmatprep.subr.bf16.mxu0 %v185
    %752 = vmatpush1.bf16.msra.mxu0 %v184
    %753 = vmatprep.subr.bf16.mxu0 %v189
    %754 = vmatpush1.bf16.msra.mxu0 %v188
    %755 = vmatprep.subr.bf16.mxu0 %v193
    %756 = vmatpush1.bf16.msra.mxu0 %v192
    %757 = vmatprep.subr.bf16.mxu0 %v197
    %758 = vmatpush1.bf16.msra.mxu0 %v196
    %759 = vmatprep.subr.bf16.mxu0 %v201
    %760 = vmatpush1.bf16.msra.mxu0 %v200
    %761 = vmatprep.subr.bf16.mxu0 %v205
    %762 = vmatpush1.bf16.msra.mxu0 %v204
    %763 = vmatprep.subr.bf16.mxu0 %v209
    %764 = vmatpush1.bf16.msra.mxu0 %v208
    %765 = vmatprep.subr.bf16.mxu0 %v213
    %766 = vmatpush1.bf16.msra.mxu0 %v212
    %767 = vmatprep.subr.bf16.mxu0 0
    %768 = vmatpush1.bf16.msra.mxu0 0
    %769 = vmatprep.subr.bf16.mxu0 0
    %770 = vmatpush1.bf16.msra.mxu0 0
    %771 = vmatprep.subr.bf16.mxu0 0
    %772 = vmatpush1.bf16.msra.mxu0 0
    %773 = vmatprep.subr.bf16.mxu0 0
    %774 = vmatpush1.bf16.msra.mxu0 0
    %775 = vmatprep.subr.bf16.mxu0 0
    %776 = vmatpush1.bf16.msra.mxu0 0
    %777 = vmatprep.subr.bf16.mxu0 0
    %778 = vmatpush1.bf16.msra.mxu0 0
    %779 = vmatprep.subr.bf16.mxu0 0
    %780 = vmatpush1.bf16.msra.mxu0 0
    %781 = vmatprep.subr.bf16.mxu0 0
    %782 = vmatpush1.bf16.msra.mxu0 0
    %783 = vmatprep.mubr.bf16.mxu0 0
    %784 = vmatmul.mubr.bf16.gmra.mrb[0].mxu0 %v709
    %v785 = vpop.f32.mrb[0].mxu0
    %v786 = vadd.f32 0.0, %v785
    %v787 = vpop.f32.mrb[0].mxu0
    %v788 = vadd.f32 0.0, %v787
    %v789 = vpop.f32.mrb[0].mxu0
    %v790 = vpop.f32.mrb[0].mxu0
    %791 = vdwg.mxu0
    %v792 = vadd.f32 %v705, %v745
    %v793 = vadd.f32 %v706, %v747
    %v794 = vadd.f32 %v707, %v786
    %v795 = vadd.f32 %v708, %v788
    %v796 = vxor.u32 %v792, 2147483648
    %v797 = vmul.f32 %v796, 1.442695
    %v798 = vpow.pop %v797
    %v799 = vadd.f32 %v798, 1.0
    %v800 = vrcp.pop %v799
    %v801 = vmul.f32 1.0, %v800
    %v802 = vxor.u32 %v793, 2147483648
    %v803 = vmul.f32 %v802, 1.442695
    %v804 = vpow.pop %v803
    %v805 = vadd.f32 %v804, 1.0
    %v806 = vrcp.pop %v805
    %v807 = vmul.f32 1.0, %v806
    %v808 = vtanh.pop %v794
    %v809 = vxor.u32 %v795, 2147483648
    %v810 = vmul.f32 %v809, 1.442695
    %v811 = vpow.pop %v810
    %v812 = vadd.f32 %v811, 1.0
    %v813 = vrcp.pop %v812
    %v814 = vmul.f32 1.0, %v813
    %v815 = vmul.f32 %v807, %v701
    %v816 = vmul.f32 %v801, %v808
    %v817 = vadd.f32 %v815, %v816
    %v818 = vtanh.pop %v817
    %v819 = vmul.f32 %v814, %v818
    %s820 = scalar_lea.vmem [#allocation4], 160
    %v821 = vld [vmem:[%s820] sm:$0xff]
    %v822 = vld [vmem:[%s820 + $0x8] sm:$0xff]
    %v823 = vld [vmem:[%s820 + $0x10] sm:$0xff]
    %v824 = vld [vmem:[%s820 + $0x18] sm:$0xff]
    %v825 = vpack.c.bf16 %v819, %v819
    %826 = vmatprep.subr.bf16.mxu0 %v183
    %827 = vmatpush1.bf16.msra.mxu0 %v182
    %828 = vmatprep.subr.bf16.mxu0 %v187
    %829 = vmatpush1.bf16.msra.mxu0 %v186
    %830 = vmatprep.subr.bf16.mxu0 %v191
    %831 = vmatpush1.bf16.msra.mxu0 %v190
    %832 = vmatprep.subr.bf16.mxu0 %v195
    %833 = vmatpush1.bf16.msra.mxu0 %v194
    %834 = vmatprep.subr.bf16.mxu0 %v199
    %835 = vmatpush1.bf16.msra.mxu0 %v198
    %836 = vmatprep.subr.bf16.mxu0 %v203
    %837 = vmatpush1.bf16.msra.mxu0 %v202
    %838 = vmatprep.subr.bf16.mxu0 %v207
    %839 = vmatpush1.bf16.msra.mxu0 %v206
    %840 = vmatprep.subr.bf16.mxu0 %v211
    %841 = vmatpush1.bf16.msra.mxu0 %v210
    %842 = vmatprep.subr.bf16.mxu0 0
    %843 = vmatpush1.bf16.msra.mxu0 0
    %844 = vmatprep.subr.bf16.mxu0 0
    %845 = vmatpush1.bf16.msra.mxu0 0
    %846 = vmatprep.subr.bf16.mxu0 0
    %847 = vmatpush1.bf16.msra.mxu0 0
    %848 = vmatprep.subr.bf16.mxu0 0
    %849 = vmatpush1.bf16.msra.mxu0 0
    %850 = vmatprep.subr.bf16.mxu0 0
    %851 = vmatpush1.bf16.msra.mxu0 0
    %852 = vmatprep.subr.bf16.mxu0 0
    %853 = vmatpush1.bf16.msra.mxu0 0
    %854 = vmatprep.subr.bf16.mxu0 0
    %855 = vmatpush1.bf16.msra.mxu0 0
    %856 = vmatprep.subr.bf16.mxu0 0
    %857 = vmatpush1.bf16.msra.mxu0 0
    %858 = vmatprep.mubr.bf16.mxu0 0
    %859 = vmatmul.mubr.bf16.gmra.mrb[0].mxu0 %v825
    %v860 = vpop.f32.mrb[0].mxu0
    %v861 = vadd.f32 0.0, %v860
    %v862 = vpop.f32.mrb[0].mxu0
    %v863 = vadd.f32 0.0, %v862
    %v864 = vpop.f32.mrb[0].mxu0
    %v865 = vpop.f32.mrb[0].mxu0
    %866 = vdwg.mxu0
    %867 = vmatprep.subr.bf16.mxu0 %v185
    %868 = vmatpush1.bf16.msra.mxu0 %v184
    %869 = vmatprep.subr.bf16.mxu0 %v189
    %870 = vmatpush1.bf16.msra.mxu0 %v188
    %871 = vmatprep.subr.bf16.mxu0 %v193
    %872 = vmatpush1.bf16.msra.mxu0 %v192
    %873 = vmatprep.subr.bf16.mxu0 %v197
    %874 = vmatpush1.bf16.msra.mxu0 %v196
    %875 = vmatprep.subr.bf16.mxu0 %v201
    %876 = vmatpush1.bf16.msra.mxu0 %v200
    %877 = vmatprep.subr.bf16.mxu0 %v205
    %878 = vmatpush1.bf16.msra.mxu0 %v204
    %879 = vmatprep.subr.bf16.mxu0 %v209
    %880 = vmatpush1.bf16.msra.mxu0 %v208
    %881 = vmatprep.subr.bf16.mxu0 %v213
    %882 = vmatpush1.bf16.msra.mxu0 %v212
    %883 = vmatprep.subr.bf16.mxu0 0
    %884 = vmatpush1.bf16.msra.mxu0 0
    %885 = vmatprep.subr.bf16.mxu0 0
    %886 = vmatpush1.bf16.msra.mxu0 0
    %887 = vmatprep.subr.bf16.mxu0 0
    %888 = vmatpush1.bf16.msra.mxu0 0
    %889 = vmatprep.subr.bf16.mxu0 0
    %890 = vmatpush1.bf16.msra.mxu0 0
    %891 = vmatprep.subr.bf16.mxu0 0
    %892 = vmatpush1.bf16.msra.mxu0 0
    %893 = vmatprep.subr.bf16.mxu0 0
    %894 = vmatpush1.bf16.msra.mxu0 0
    %895 = vmatprep.subr.bf16.mxu0 0
    %896 = vmatpush1.bf16.msra.mxu0 0
    %897 = vmatprep.subr.bf16.mxu0 0
    %898 = vmatpush1.bf16.msra.mxu0 0
    %899 = vmatprep.mubr.bf16.mxu0 0
    %900 = vmatmul.mubr.bf16.gmra.mrb[0].mxu0 %v825
    %v901 = vpop.f32.mrb[0].mxu0
    %v902 = vadd.f32 0.0, %v901
    %v903 = vpop.f32.mrb[0].mxu0
    %v904 = vadd.f32 0.0, %v903
    %v905 = vpop.f32.mrb[0].mxu0
    %v906 = vpop.f32.mrb[0].mxu0
    %907 = vdwg.mxu0
    %v908 = vadd.f32 %v821, %v861
    %v909 = vadd.f32 %v822, %v863
    %v910 = vadd.f32 %v823, %v902
    %v911 = vadd.f32 %v824, %v904
    %v912 = vxor.u32 %v908, 2147483648
    %v913 = vmul.f32 %v912, 1.442695
    %v914 = vpow.pop %v913
    %v915 = vadd.f32 %v914, 1.0
    %v916 = vrcp.pop %v915
    %v917 = vmul.f32 1.0, %v916
    %v918 = vxor.u32 %v909, 2147483648
    %v919 = vmul.f32 %v918, 1.442695
    %v920 = vpow.pop %v919
    %v921 = vadd.f32 %v920, 1.0
    %v922 = vrcp.pop %v921
    %v923 = vmul.f32 1.0, %v922
    %v924 = vtanh.pop %v910
    %v925 = vxor.u32 %v911, 2147483648
    %v926 = vmul.f32 %v925, 1.442695
    %v927 = vpow.pop %v926
    %v928 = vadd.f32 %v927, 1.0
    %v929 = vrcp.pop %v928
    %v930 = vmul.f32 1.0, %v929
    %v931 = vmul.f32 %v923, %v817
    %v932 = vmul.f32 %v917, %v924
    %v933 = vadd.f32 %v931, %v932
    %v934 = vtanh.pop %v933
    %v935 = vmul.f32 %v930, %v934
    %s936 = scalar_lea.vmem [#allocation4], 192
    %v937 = vld [vmem:[%s936] sm:$0xff]
    %v938 = vld [vmem:[%s936 + $0x8] sm:$0xff]
    %v939 = vld [vmem:[%s936 + $0x10] sm:$0xff]
    %v940 = vld [vmem:[%s936 + $0x18] sm:$0xff]
    %v941 = vpack.c.bf16 %v935, %v935
    %942 = vmatprep.subr.bf16.mxu0 %v183
    %943 = vmatpush1.bf16.msra.mxu0 %v182
    %944 = vmatprep.subr.bf16.mxu0 %v187
    %945 = vmatpush1.bf16.msra.mxu0 %v186
    %946 = vmatprep.subr.bf16.mxu0 %v191
    %947 = vmatpush1.bf16.msra.mxu0 %v190
    %948 = vmatprep.subr.bf16.mxu0 %v195
    %949 = vmatpush1.bf16.msra.mxu0 %v194
    %950 = vmatprep.subr.bf16.mxu0 %v199
    %951 = vmatpush1.bf16.msra.mxu0 %v198
    %952 = vmatprep.subr.bf16.mxu0 %v203
    %953 = vmatpush1.bf16.msra.mxu0 %v202
    %954 = vmatprep.subr.bf16.mxu0 %v207
    %955 = vmatpush1.bf16.msra.mxu0 %v206
    %956 = vmatprep.subr.bf16.mxu0 %v211
    %957 = vmatpush1.bf16.msra.mxu0 %v210
    %958 = vmatprep.subr.bf16.mxu0 0
    %959 = vmatpush1.bf16.msra.mxu0 0
    %960 = vmatprep.subr.bf16.mxu0 0
    %961 = vmatpush1.bf16.msra.mxu0 0
    %962 = vmatprep.subr.bf16.mxu0 0
    %963 = vmatpush1.bf16.msra.mxu0 0
    %964 = vmatprep.subr.bf16.mxu0 0
    %965 = vmatpush1.bf16.msra.mxu0 0
    %966 = vmatprep.subr.bf16.mxu0 0
    %967 = vmatpush1.bf16.msra.mxu0 0
    %968 = vmatprep.subr.bf16.mxu0 0
    %969 = vmatpush1.bf16.msra.mxu0 0
    %970 = vmatprep.subr.bf16.mxu0 0
    %971 = vmatpush1.bf16.msra.mxu0 0
    %972 = vmatprep.subr.bf16.mxu0 0
    %973 = vmatpush1.bf16.msra.mxu0 0
    %974 = vmatprep.mubr.bf16.mxu0 0
    %975 = vmatmul.mubr.bf16.gmra.mrb[0].mxu0 %v941
    %v976 = vpop.f32.mrb[0].mxu0
    %v977 = vadd.f32 0.0, %v976
    %v978 = vpop.f32.mrb[0].mxu0
    %v979 = vadd.f32 0.0, %v978
    %v980 = vpop.f32.mrb[0].mxu0
    %v981 = vpop.f32.mrb[0].mxu0
    %982 = vdwg.mxu0
    %983 = vmatprep.subr.bf16.mxu0 %v185
    %984 = vmatpush1.bf16.msra.mxu0 %v184
    %985 = vmatprep.subr.bf16.mxu0 %v189
    %986 = vmatpush1.bf16.msra.mxu0 %v188
    %987 = vmatprep.subr.bf16.mxu0 %v193
    %988 = vmatpush1.bf16.msra.mxu0 %v192
    %989 = vmatprep.subr.bf16.mxu0 %v197
    %990 = vmatpush1.bf16.msra.mxu0 %v196
    %991 = vmatprep.subr.bf16.mxu0 %v201
    %992 = vmatpush1.bf16.msra.mxu0 %v200
    %993 = vmatprep.subr.bf16.mxu0 %v205
    %994 = vmatpush1.bf16.msra.mxu0 %v204
    %995 = vmatprep.subr.bf16.mxu0 %v209
    %996 = vmatpush1.bf16.msra.mxu0 %v208
    %997 = vmatprep.subr.bf16.mxu0 %v213
    %998 = vmatpush1.bf16.msra.mxu0 %v212
    %999 = vmatprep.subr.bf16.mxu0 0
    %1000 = vmatpush1.bf16.msra.mxu0 0
    %1001 = vmatprep.subr.bf16.mxu0 0
    %1002 = vmatpush1.bf16.msra.mxu0 0
    %1003 = vmatprep.subr.bf16.mxu0 0
    %1004 = vmatpush1.bf16.msra.mxu0 0
    %1005 = vmatprep.subr.bf16.mxu0 0
    %1006 = vmatpush1.bf16.msra.mxu0 0
    %1007 = vmatprep.subr.bf16.mxu0 0
    %1008 = vmatpush1.bf16.msra.mxu0 0
    %1009 = vmatprep.subr.bf16.mxu0 0
    %1010 = vmatpush1.bf16.msra.mxu0 0
    %1011 = vmatprep.subr.bf16.mxu0 0
    %1012 = vmatpush1.bf16.msra.mxu0 0
    %1013 = vmatprep.subr.bf16.mxu0 0
    %1014 = vmatpush1.bf16.msra.mxu0 0
    %1015 = vmatprep.mubr.bf16.mxu0 0
    %1016 = vmatmul.mubr.bf16.gmra.mrb[0].mxu0 %v941
    %v1017 = vpop.f32.mrb[0].mxu0
    %v1018 = vadd.f32 0.0, %v1017
    %v1019 = vpop.f32.mrb[0].mxu0
    %v1020 = vadd.f32 0.0, %v1019
    %v1021 = vpop.f32.mrb[0].mxu0
    %v1022 = vpop.f32.mrb[0].mxu0
    %1023 = vdwg.mxu0
    %v1024 = vadd.f32 %v937, %v977
    %v1025 = vadd.f32 %v938, %v979
    %v1026 = vadd.f32 %v939, %v1018
    %v1027 = vadd.f32 %v940, %v1020
    %v1028 = vxor.u32 %v1024, 2147483648
    %v1029 = vmul.f32 %v1028, 1.442695
    %v1030 = vpow.pop %v1029
    %v1031 = vadd.f32 %v1030, 1.0
    %v1032 = vrcp.pop %v1031
    %v1033 = vmul.f32 1.0, %v1032
    %v1034 = vxor.u32 %v1025, 2147483648
    %v1035 = vmul.f32 %v1034, 1.442695
    %v1036 = vpow.pop %v1035
    %v1037 = vadd.f32 %v1036, 1.0
    %v1038 = vrcp.pop %v1037
    %v1039 = vmul.f32 1.0, %v1038
    %v1040 = vtanh.pop %v1026
    %v1041 = vxor.u32 %v1027, 2147483648
    %v1042 = vmul.f32 %v1041, 1.442695
    %v1043 = vpow.pop %v1042
    %v1044 = vadd.f32 %v1043, 1.0
    %v1045 = vrcp.pop %v1044
    %v1046 = vmul.f32 1.0, %v1045
    %v1047 = vmul.f32 %v1039, %v933
    %v1048 = vmul.f32 %v1033, %v1040
    %v1049 = vadd.f32 %v1047, %v1048
    %v1050 = vtanh.pop %v1049
    %v1051 = vmul.f32 %v1046, %v1050
    %s1052 = scalar_lea.vmem [#allocation4], 224
    %v1053 = vld [vmem:[%s1052] sm:$0xff]
    %v1054 = vld [vmem:[%s1052 + $0x8] sm:$0xff]
    %v1055 = vld [vmem:[%s1052 + $0x10] sm:$0xff]
    %v1056 = vld [vmem:[%s1052 + $0x18] sm:$0xff]
    %v1057 = vpack.c.bf16 %v1051, %v1051
    %1058 = vmatprep.subr.bf16.mxu0 %v183
    %1059 = vmatpush1.bf16.msra.mxu0 %v182
    %1060 = vmatprep.subr.bf16.mxu0 %v187
    %1061 = vmatpush1.bf16.msra.mxu0 %v186
    %1062 = vmatprep.subr.bf16.mxu0 %v191
    %1063 = vmatpush1.bf16.msra.mxu0 %v190
    %1064 = vmatprep.subr.bf16.mxu0 %v195
    %1065 = vmatpush1.bf16.msra.mxu0 %v194
    %1066 = vmatprep.subr.bf16.mxu0 %v199
    %1067 = vmatpush1.bf16.msra.mxu0 %v198
    %1068 = vmatprep.subr.bf16.mxu0 %v203
    %1069 = vmatpush1.bf16.msra.mxu0 %v202
    %1070 = vmatprep.subr.bf16.mxu0 %v207
    %1071 = vmatpush1.bf16.msra.mxu0 %v206
    %1072 = vmatprep.subr.bf16.mxu0 %v211
    %1073 = vmatpush1.bf16.msra.mxu0 %v210
    %1074 = vmatprep.subr.bf16.mxu0 0
    %1075 = vmatpush1.bf16.msra.mxu0 0
    %1076 = vmatprep.subr.bf16.mxu0 0
    %1077 = vmatpush1.bf16.msra.mxu0 0
    %1078 = vmatprep.subr.bf16.mxu0 0
    %1079 = vmatpush1.bf16.msra.mxu0 0
    %1080 = vmatprep.subr.bf16.mxu0 0
    %1081 = vmatpush1.bf16.msra.mxu0 0
    %1082 = vmatprep.subr.bf16.mxu0 0
    %1083 = vmatpush1.bf16.msra.mxu0 0
    %1084 = vmatprep.subr.bf16.mxu0 0
    %1085 = vmatpush1.bf16.msra.mxu0 0
    %1086 = vmatprep.subr.bf16.mxu0 0
    %1087 = vmatpush1.bf16.msra.mxu0 0
    %1088 = vmatprep.subr.bf16.mxu0 0
    %1089 = vmatpush1.bf16.msra.mxu0 0
    %1090 = vmatprep.mubr.bf16.mxu0 0
    %1091 = vmatmul.mubr.bf16.gmra.mrb[0].mxu0 %v1057
    %v1092 = vpop.f32.mrb[0].mxu0
    %v1093 = vadd.f32 0.0, %v1092
    %v1094 = vpop.f32.mrb[0].mxu0
    %v1095 = vadd.f32 0.0, %v1094
    %v1096 = vpop.f32.mrb[0].mxu0
    %v1097 = vpop.f32.mrb[0].mxu0
    %1098 = vdwg.mxu0
    %1099 = vmatprep.subr.bf16.mxu0 %v185
    %1100 = vmatpush1.bf16.msra.mxu0 %v184
    %1101 = vmatprep.subr.bf16.mxu0 %v189
    %1102 = vmatpush1.bf16.msra.mxu0 %v188
    %1103 = vmatprep.subr.bf16.mxu0 %v193
    %1104 = vmatpush1.bf16.msra.mxu0 %v192
    %1105 = vmatprep.subr.bf16.mxu0 %v197
    %1106 = vmatpush1.bf16.msra.mxu0 %v196
    %1107 = vmatprep.subr.bf16.mxu0 %v201
    %1108 = vmatpush1.bf16.msra.mxu0 %v200
    %1109 = vmatprep.subr.bf16.mxu0 %v205
    %1110 = vmatpush1.bf16.msra.mxu0 %v204
    %1111 = vmatprep.subr.bf16.mxu0 %v209
    %1112 = vmatpush1.bf16.msra.mxu0 %v208
    %1113 = vmatprep.subr.bf16.mxu0 %v213
    %1114 = vmatpush1.bf16.msra.mxu0 %v212
    %1115 = vmatprep.subr.bf16.mxu0 0
    %1116 = vmatpush1.bf16.msra.mxu0 0
    %1117 = vmatprep.subr.bf16.mxu0 0
    %1118 = vmatpush1.bf16.msra.mxu0 0
    %1119 = vmatprep.subr.bf16.mxu0 0
    %1120 = vmatpush1.bf16.msra.mxu0 0
    %1121 = vmatprep.subr.bf16.mxu0 0
    %1122 = vmatpush1.bf16.msra.mxu0 0
    %1123 = vmatprep.subr.bf16.mxu0 0
    %1124 = vmatpush1.bf16.msra.mxu0 0
    %1125 = vmatprep.subr.bf16.mxu0 0
    %1126 = vmatpush1.bf16.msra.mxu0 0
    %1127 = vmatprep.subr.bf16.mxu0 0
    %1128 = vmatpush1.bf16.msra.mxu0 0
    %1129 = vmatprep.subr.bf16.mxu0 0
    %1130 = vmatpush1.bf16.msra.mxu0 0
    %1131 = vmatprep.mubr.bf16.mxu0 0
    %1132 = vmatmul.mubr.bf16.gmra.mrb[0].mxu0 %v1057
    %v1133 = vpop.f32.mrb[0].mxu0
    %v1134 = vadd.f32 0.0, %v1133
    %v1135 = vpop.f32.mrb[0].mxu0
    %v1136 = vadd.f32 0.0, %v1135
    %v1137 = vpop.f32.mrb[0].mxu0
    %v1138 = vpop.f32.mrb[0].mxu0
    %1139 = vdwg.mxu0
    %v1140 = vadd.f32 %v1053, %v1093
    %v1141 = vadd.f32 %v1054, %v1095
    %v1142 = vadd.f32 %v1055, %v1134
    %v1143 = vadd.f32 %v1056, %v1136
    %v1144 = vxor.u32 %v1140, 2147483648
    %v1145 = vmul.f32 %v1144, 1.442695
    %v1146 = vpow.pop %v1145
    %v1147 = vadd.f32 %v1146, 1.0
    %v1148 = vrcp.pop %v1147
    %v1149 = vmul.f32 1.0, %v1148
    %v1150 = vxor.u32 %v1141, 2147483648
    %v1151 = vmul.f32 %v1150, 1.442695
    %v1152 = vpow.pop %v1151
    %v1153 = vadd.f32 %v1152, 1.0
    %v1154 = vrcp.pop %v1153
    %v1155 = vmul.f32 1.0, %v1154
    %v1156 = vtanh.pop %v1142
    %v1157 = vxor.u32 %v1143, 2147483648
    %v1158 = vmul.f32 %v1157, 1.442695
    %v1159 = vpow.pop %v1158
    %v1160 = vadd.f32 %v1159, 1.0
    %v1161 = vrcp.pop %v1160
    %v1162 = vmul.f32 1.0, %v1161
    %v1163 = vmul.f32 %v1155, %v1049
    %v1164 = vmul.f32 %v1149, %v1156
    %v1165 = vadd.f32 %v1163, %v1164
    %v1166 = vtanh.pop %v1165
    %v1167 = vmul.f32 %v1162, %v1166
    %1168 = vst [vmem:[#allocation2] sm:$0xff] %v1167
    %1169 = vst [vmem:[#allocation3] sm:$0xff] %v1165
    // Predicated region
    $region22: #{tpu_custom_call.1} parent=1 // pred_check
      %p1170 = pneg %p41
    $region23: #{tpu_custom_call.1} parent=1 // pred_check_branch
      %1172 = sbr.rel (%p1170) target = $region25
    $region24: #{tpu_custom_call.1} parent=1 // pred_region
      %1173 = vst [vmem:[#allocation9] sm:$0xff] %v1167
    $region25: #{tpu_custom_call.1} parent=1 // pred_fallthru
      _
    // Predicated region
    $region26: #{tpu_custom_call.1} parent=1 // pred_check
      _
    $region27: #{tpu_custom_call.1} parent=1 // pred_check_branch
      %1175 = sbr.rel (0) target = $region29
    $region28: #{tpu_custom_call.1} parent=1 // pred_region
      %s1177 = ssub.s32 128, 128
      %1178 = vsyncadd [#allocation6], %s1177
      %s1180 = sshll.u32 [#allocation9], 4
      %s1181 = int_to_ptr.vmem [resolvable:$true] %s1180
      %1183 = dma.vmem_to_hbm [thread:$0]  %s1181, 128, %s2, [#allocation6]
    $region29: #{tpu_custom_call.1} parent=1 // pred_fallthru
      _
    // Predicated region
    $region30: #{tpu_custom_call.1} parent=1 // pred_check
      _
    $region31: #{tpu_custom_call.1} parent=1 // pred_check_branch
      %1185 = sbr.rel (0) target = $region33
    $region32: #{tpu_custom_call.1} parent=1 // pred_region
      %1186 = dma.done [#allocation6], 128
    $region33: #{tpu_custom_call.1} parent=1 // pred_fallthru
      _
    %1187 = vsyncpa [#allocation5], 1
    %1188 = vsyncpa [#allocation8], 1
    %1189 = vsyncpa [#allocation6], 1

</llo_original>
